<compile_context>
chip_gen: v7x
topology: tpu7x:2x2x1
jax: 0.10.0
libtpu: 0.0.40
codegen_flags: <defaults>
</compile_context>

<pallas_src>
import functools
import math

import jax
import jax.numpy as jnp
from jax.experimental import pallas as pl
from jax.experimental.pallas import tpu as pltpu  # noqa: F401  (TPU backend)

# ---------------- model config (small, consistent with the module's structure) -------
VOCAB = 100
TYPE_VOCAB = 2
MAX_POS = 16
HIDDEN = 32
NUM_HEADS = 2
HEAD_DIM = HIDDEN // NUM_HEADS
FFN = 64
NUM_LAYERS = 2
N_CLASSES = 2
LN_EPS = 1e-12
OUT_PAD = 128          # lane-dense kernel output width
ROWS_PER_LAYER = 10    # bq bk bv bo ln1g ln1b b1 b2 ln2g ln2b


# ---------------------------------- fused Pallas kernel ------------------------------
def fused_forward_kernel(emb_ref, bias_ref, w_attn_ref, w1_ref, w2_ref, slab_ref,
                         pool_w_ref, cls_w_ref, out_ref, *,
                         num_layers, num_heads, head_dim, hidden, ffn, eps):
    H, DH, NH = hidden, head_dim, num_heads
    scale = 1.0 / math.sqrt(DH)
    c_gelu = math.sqrt(2.0 / math.pi)

    def row(i, w):
        # one full lane-dense [1, 128] row; prefix-slice the value to the needed width
        return slab_ref[i:i + 1, :][:, :w]

    def layer_norm(x, g, b):
        mu = jnp.mean(x, axis=-1, keepdims=True)
        var = jnp.maximum(jnp.mean(x * x, axis=-1, keepdims=True) - mu * mu, 0.0)
        return (x - mu) * jax.lax.rsqrt(var + eps) * g + b

    # ---- loop-invariant values, hoisted out of the unrolled layer loop ----
    lane = jax.lax.broadcasted_iota(jnp.int32, (1, H), 1)
    head_masks = [((lane >= h * DH) & (lane < (h + 1) * DH)).astype(jnp.float32)
                  for h in range(NH)]
    attn_bias = bias_ref[...]                                   # [B*S, B*S] additive bias

    # embedding LayerNorm
    x = layer_norm(emb_ref[...], row(0, H), row(1, H))          # [B*S, H]

    for l in range(num_layers):                                  # static unroll
        base = 2 + l * ROWS_PER_LAYER
        wb = 4 * l

        # ---- Q / K / V projections: lane-dense [B*S, H] slabs, no activation slicing ----
        q = jnp.dot(x, w_attn_ref[wb + 0], preferred_element_type=jnp.float32) + row(base + 0, H)
        k = jnp.dot(x, w_attn_ref[wb + 1], preferred_element_type=jnp.float32) + row(base + 1, H)
        v = jnp.dot(x, w_attn_ref[wb + 2], preferred_element_type=jnp.float32) + row(base + 2, H)

        # ---- multi-head attention via per-head lane masks + block-diagonal bias ----
        ctx = jnp.zeros_like(x)
        for h in range(NH):
            s = jax.lax.dot_general(
                q * head_masks[h], k, (((1,), (1,)), ((), ())),
                preferred_element_type=jnp.float32) * scale + attn_bias      # [B*S, B*S]
            m = jnp.max(s, axis=-1, keepdims=True)
            p = jnp.exp(s - m)
            p = p * pl.reciprocal(jnp.sum(p, axis=-1, keepdims=True), approx=True)
            # head h's output lands in its own lanes; heads sum without overlap
            ctx = ctx + jnp.dot(p, v * head_masks[h], preferred_element_type=jnp.float32)

        # ---- attention output projection + residual LayerNorm ----
        attn_out = (jnp.dot(ctx, w_attn_ref[wb + 3], preferred_element_type=jnp.float32)
                    + row(base + 3, H))
        x = layer_norm(x + attn_out, row(base + 4, H), row(base + 5, H))

        # ---- feed-forward (GELU, tanh approximation) + residual LayerNorm ----
        hf = jnp.dot(x, w1_ref[l], preferred_element_type=jnp.float32) + row(base + 6, ffn)
        hf = 0.5 * hf * (1.0 + jnp.tanh(c_gelu * (hf + 0.044715 * hf * hf * hf)))
        hf = jnp.dot(hf, w2_ref[l], preferred_element_type=jnp.float32) + row(base + 7, H)
        x = layer_norm(x + hf, row(base + 8, H), row(base + 9, H))

    # ---- pooler + classifier on the FULL token slab (same MXU pass as on B rows);
    #      the wrapper picks the CLS rows.  nn.Dropout(p=0.3) is identity in eval mode.
    pool_b = row(2 + ROWS_PER_LAYER * num_layers, H)
    cls_b = slab_ref[3 + ROWS_PER_LAYER * num_layers:4 + ROWS_PER_LAYER * num_layers, :]  # [1,128]
    pooled = jnp.tanh(jnp.dot(x, pool_w_ref[...], preferred_element_type=jnp.float32) + pool_b)
    out_ref[...] = (jnp.dot(pooled, cls_w_ref[...], preferred_element_type=jnp.float32)
                    + cls_b)                                      # lane-dense [B*S, 128] store


# ----------------------------------- params & packing ---------------------------------
def init_params(key):
    def nrm(k, shape):
        return (0.02 * jax.random.normal(k, shape)).astype(jnp.float32)

    keys = iter(jax.random.split(key, 16))
    L, H = NUM_LAYERS, HIDDEN
    return {
        "word_emb": nrm(next(keys), (VOCAB, H)),
        "pos_emb": nrm(next(keys), (MAX_POS, H)),
        "type_emb": nrm(next(keys), (TYPE_VOCAB, H)),
        "emb_ln_g": jnp.ones((H,), jnp.float32),
        "emb_ln_b": jnp.zeros((H,), jnp.float32),
        # Wq, Wk, Wv, Wo stacked along one leading axis per layer
        "w_attn": nrm(next(keys), (L * 4, H, H)),
        "bq": jnp.zeros((L, H), jnp.float32),
        "bk": jnp.zeros((L, H), jnp.float32),
        "bv": jnp.zeros((L, H), jnp.float32),
        "bo": jnp.zeros((L, H), jnp.float32),
        "w1": nrm(next(keys), (L, H, FFN)),
        "b1": jnp.zeros((L, FFN), jnp.float32),
        "w2": nrm(next(keys), (L, FFN, H)),
        "b2": jnp.zeros((L, H), jnp.float32),
        "ln1_g": jnp.ones((L, H), jnp.float32),
        "ln1_b": jnp.zeros((L, H), jnp.float32),
        "ln2_g": jnp.ones((L, H), jnp.float32),
        "ln2_b": jnp.zeros((L, H), jnp.float32),
        "pool_w": nrm(next(keys), (H, H)),
        "pool_b": jnp.zeros((H,), jnp.float32),
        "cls_w": nrm(next(keys), (H, N_CLASSES)),
        "cls_b": jnp.zeros((N_CLASSES,), jnp.float32),
    }


def pack_params(params):
    """Pack all tiny bias / LayerNorm params into one [24, 128] slab (done once)."""
    def pad_row(v):
        v = v.reshape(1, -1)
        return jnp.pad(v, ((0, 0), (0, OUT_PAD - v.shape[-1])))

    rows = [pad_row(params["emb_ln_g"]), pad_row(params["emb_ln_b"])]
    for l in range(NUM_LAYERS):
        for name in ("bq", "bk", "bv", "bo", "ln1_g", "ln1_b", "b1", "b2", "ln2_g", "ln2_b"):
            rows.append(pad_row(params[name][l]))
    rows.append(pad_row(params["pool_b"]))
    rows.append(pad_row(params["cls_b"]))
    slab = jnp.concatenate(rows, axis=0)                               # [4 + 10*L, 128]

    cls_w_pad = jnp.pad(params["cls_w"], ((0, 0), (0, OUT_PAD - N_CLASSES)))  # [H, 128]
    return {
        "word_emb": params["word_emb"], "pos_emb": params["pos_emb"],
        "type_emb": params["type_emb"],
        "w_attn": params["w_attn"], "w1": params["w1"], "w2": params["w2"],
        "slab": slab, "pool_w": params["pool_w"], "cls_w": cls_w_pad,
    }


# ----------------------------------- forward ------------------------------------------
def spam_classifier_forward(packed, input_ids, attention_mask, token_type_ids=None):
    B, S = input_ids.shape
    if token_type_ids is None:
        token_type_ids = jnp.zeros((B, S), dtype=jnp.int32)

    # embedding gather is host-side glue; everything else runs in the fused kernel
    emb = (packed["word_emb"][input_ids]
           + packed["pos_emb"][:S][None, :, :]
           + packed["type_emb"][token_type_ids])
    emb = emb.reshape(B * S, HIDDEN).astype(jnp.float32)

    # combined additive attention bias: block-diagonal (same sequence) + key padding
    tok_batch = jnp.repeat(jnp.arange(B), S)                           # [B*S]
    same_batch = tok_batch[:, None] == tok_batch[None, :]              # [B*S, B*S]
    key_valid = attention_mask.reshape(-1).astype(jnp.float32)         # [B*S]
    attn_bias = jnp.where(same_batch & (key_valid[None, :] > 0.5),
                          0.0, -1e9).astype(jnp.float32)               # [B*S, B*S]

    kernel = functools.partial(
        fused_forward_kernel, num_layers=NUM_LAYERS, num_heads=NUM_HEADS,
        head_dim=HEAD_DIM, hidden=HIDDEN, ffn=FFN, eps=LN_EPS)

    # one grid-less pallas_call: 8 packed operands, all state resident in VMEM (<< 1 MiB)
    out = pl.pallas_call(
        kernel,
        out_shape=jax.ShapeDtypeStruct((B * S, OUT_PAD), jnp.float32),
    )(emb, attn_bias, packed["w_attn"], packed["w1"], packed["w2"],
      packed["slab"], packed["pool_w"], packed["cls_w"])

    # pick the [CLS] row of each sequence and the real logit lanes
    return out[::S, :N_CLASSES]


if __name__ == "__main__":
    key = jax.random.PRNGKey(0)
    pkey, ikey = jax.random.split(key)
    packed = pack_params(init_params(pkey))

    B, S = 2, 8
    input_ids = jax.random.randint(ikey, (B, S), 0, VOCAB, dtype=jnp.int32)
    attention_mask = jnp.array([[1, 1, 1, 1, 1, 1, 1, 1],
                                [1, 1, 1, 1, 1, 1, 0, 0]], dtype=jnp.int32)

    logits = spam_classifier_forward(packed, input_ids, attention_mask)
    jax.block_until_ready(logits)
    assert logits.shape == (B, N_CLASSES)
    print("KERNEL_OK")
</pallas_src>

<mosaic_0001>
module attributes {stable_mosaic.version = 11 : i64} {
  func.func @fused_forward_kernel(%arg0: memref<16x32xf32, #tpu.memory_space<vmem>>, %arg1: memref<16x16xf32, #tpu.memory_space<vmem>>, %arg2: memref<8x32x32xf32, #tpu.memory_space<vmem>>, %arg3: memref<2x32x64xf32, #tpu.memory_space<vmem>>, %arg4: memref<2x64x32xf32, #tpu.memory_space<vmem>>, %arg5: memref<24x128xf32, #tpu.memory_space<vmem>>, %arg6: memref<32x32xf32, #tpu.memory_space<vmem>>, %arg7: memref<32x128xf32, #tpu.memory_space<vmem>>, %arg8: memref<16x128xf32, #tpu.memory_space<vmem>>) attributes {dimension_semantics = [], scalar_prefetch = 0 : i64, scratch_operands = 0 : i64, tpu.core_type = #tpu.core_type<tc>} {
    %0 = tpu.iota {dimensions = array<i32: 1>} : vector<1x32xi32>
    %c0_i32 = arith.constant 0 : i32
    %1 = vector.broadcast %c0_i32 : i32 to vector<1x32xi32>
    %2 = arith.cmpi sge, %0, %1 : vector<1x32xi32>
    %c16_i32 = arith.constant 16 : i32
    %3 = vector.broadcast %c16_i32 : i32 to vector<1x32xi32>
    %4 = arith.cmpi slt, %0, %3 : vector<1x32xi32>
    %5 = arith.andi %2, %4 : vector<1x32xi1>
    %6 = arith.extui %5 : vector<1x32xi1> to vector<1x32xi32>
    %7 = arith.sitofp %6 : vector<1x32xi32> to vector<1x32xf32>
    %c16_i32_0 = arith.constant 16 : i32
    %8 = vector.broadcast %c16_i32_0 : i32 to vector<1x32xi32>
    %9 = arith.cmpi sge, %0, %8 : vector<1x32xi32>
    %c32_i32 = arith.constant 32 : i32
    %10 = vector.broadcast %c32_i32 : i32 to vector<1x32xi32>
    %11 = arith.cmpi slt, %0, %10 : vector<1x32xi32>
    %12 = arith.andi %9, %11 : vector<1x32xi1>
    %13 = arith.extui %12 : vector<1x32xi1> to vector<1x32xi32>
    %14 = arith.sitofp %13 : vector<1x32xi32> to vector<1x32xf32>
    %c0 = arith.constant 0 : index
    %c0_1 = arith.constant 0 : index
    %15 = vector.load %arg1[%c0, %c0_1] : memref<16x16xf32, #tpu.memory_space<vmem>>, vector<16x16xf32>
    %c0_2 = arith.constant 0 : index
    %c0_3 = arith.constant 0 : index
    %16 = vector.load %arg0[%c0_2, %c0_3] : memref<16x32xf32, #tpu.memory_space<vmem>>, vector<16x32xf32>
    %c0_4 = arith.constant 0 : index
    %c0_5 = arith.constant 0 : index
    %17 = vector.load %arg5[%c0_4, %c0_5] : memref<24x128xf32, #tpu.memory_space<vmem>>, vector<1x128xf32>
    %18 = vector.extract_strided_slice %17 {offsets = [0, 0], sizes = [1, 32], strides = [1, 1]} : vector<1x128xf32> to vector<1x32xf32>
    %c1 = arith.constant 1 : index
    %c0_6 = arith.constant 0 : index
    %19 = vector.load %arg5[%c1, %c0_6] : memref<24x128xf32, #tpu.memory_space<vmem>>, vector<1x128xf32>
    %20 = vector.extract_strided_slice %19 {offsets = [0, 0], sizes = [1, 32], strides = [1, 1]} : vector<1x128xf32> to vector<1x32xf32>
    %cst = arith.constant dense<0.000000e+00> : vector<16xf32>
    %21 = vector.multi_reduction <add>, %16, %cst [1] : vector<16x32xf32> to vector<16xf32>
    %22 = vector.shape_cast %21 : vector<16xf32> to vector<16x1xf32>
    %cst_7 = arith.constant 3.200000e+01 : f32
    %23 = vector.broadcast %cst_7 : f32 to vector<16x1xf32>
    %24 = arith.divf %22, %23 : vector<16x1xf32>
    %25 = arith.mulf %16, %16 : vector<16x32xf32>
    %cst_8 = arith.constant dense<0.000000e+00> : vector<16xf32>
    %26 = vector.multi_reduction <add>, %25, %cst_8 [1] : vector<16x32xf32> to vector<16xf32>
    %27 = vector.shape_cast %26 : vector<16xf32> to vector<16x1xf32>
    %cst_9 = arith.constant 3.200000e+01 : f32
    %28 = vector.broadcast %cst_9 : f32 to vector<16x1xf32>
    %29 = arith.divf %27, %28 : vector<16x1xf32>
    %30 = arith.mulf %24, %24 : vector<16x1xf32>
    %31 = arith.subf %29, %30 : vector<16x1xf32>
    %cst_10 = arith.constant 0.000000e+00 : f32
    %32 = vector.broadcast %cst_10 : f32 to vector<16x1xf32>
    %33 = arith.maximumf %31, %32 : vector<16x1xf32>
    %34 = vector.broadcast %24 : vector<16x1xf32> to vector<16x32xf32>
    %35 = arith.subf %16, %34 : vector<16x32xf32>
    %cst_11 = arith.constant 9.99999996E-13 : f32
    %36 = vector.broadcast %cst_11 : f32 to vector<16x1xf32>
    %37 = arith.addf %33, %36 : vector<16x1xf32>
    %38 = math.rsqrt %37 : vector<16x1xf32>
    %39 = vector.broadcast %38 : vector<16x1xf32> to vector<16x32xf32>
    %40 = arith.mulf %35, %39 : vector<16x32xf32>
    %41 = vector.broadcast %18 : vector<1x32xf32> to vector<16x32xf32>
    %42 = arith.mulf %40, %41 : vector<16x32xf32>
    %43 = vector.broadcast %20 : vector<1x32xf32> to vector<16x32xf32>
    %44 = arith.addf %42, %43 : vector<16x32xf32>
    %c0_12 = arith.constant 0 : index
    %c0_13 = arith.constant 0 : index
    %c0_14 = arith.constant 0 : index
    %45 = vector.load %arg2[%c0_12, %c0_13, %c0_14] : memref<8x32x32xf32, #tpu.memory_space<vmem>>, vector<1x32x32xf32>
    %46 = vector.shape_cast %45 : vector<1x32x32xf32> to vector<32x32xf32>
    %cst_15 = arith.constant dense<0.000000e+00> : vector<16x32xf32>
    %47 = tpu.matmul %44, %46, %cst_15 {dimension_numbers = #tpu.dot_dimension_numbers<[1], [0], [0], [1], [0, 0, 1, 1], [], []>} : vector<16x32xf32>, vector<32x32xf32>, vector<16x32xf32> -> vector<16x32xf32>
    %c2 = arith.constant 2 : index
    %c0_16 = arith.constant 0 : index
    %48 = vector.load %arg5[%c2, %c0_16] : memref<24x128xf32, #tpu.memory_space<vmem>>, vector<1x128xf32>
    %49 = vector.extract_strided_slice %48 {offsets = [0, 0], sizes = [1, 32], strides = [1, 1]} : vector<1x128xf32> to vector<1x32xf32>
    %50 = vector.broadcast %49 : vector<1x32xf32> to vector<16x32xf32>
    %51 = arith.addf %47, %50 : vector<16x32xf32>
    %c1_17 = arith.constant 1 : index
    %c0_18 = arith.constant 0 : index
    %c0_19 = arith.constant 0 : index
    %52 = vector.load %arg2[%c1_17, %c0_18, %c0_19] : memref<8x32x32xf32, #tpu.memory_space<vmem>>, vector<1x32x32xf32>
    %53 = vector.shape_cast %52 : vector<1x32x32xf32> to vector<32x32xf32>
    %cst_20 = arith.constant dense<0.000000e+00> : vector<16x32xf32>
    %54 = tpu.matmul %44, %53, %cst_20 {dimension_numbers = #tpu.dot_dimension_numbers<[1], [0], [0], [1], [0, 0, 1, 1], [], []>} : vector<16x32xf32>, vector<32x32xf32>, vector<16x32xf32> -> vector<16x32xf32>
    %c3 = arith.constant 3 : index
    %c0_21 = arith.constant 0 : index
    %55 = vector.load %arg5[%c3, %c0_21] : memref<24x128xf32, #tpu.memory_space<vmem>>, vector<1x128xf32>
    %56 = vector.extract_strided_slice %55 {offsets = [0, 0], sizes = [1, 32], strides = [1, 1]} : vector<1x128xf32> to vector<1x32xf32>
    %57 = vector.broadcast %56 : vector<1x32xf32> to vector<16x32xf32>
    %58 = arith.addf %54, %57 : vector<16x32xf32>
    %c2_22 = arith.constant 2 : index
    %c0_23 = arith.constant 0 : index
    %c0_24 = arith.constant 0 : index
    %59 = vector.load %arg2[%c2_22, %c0_23, %c0_24] : memref<8x32x32xf32, #tpu.memory_space<vmem>>, vector<1x32x32xf32>
    %60 = vector.shape_cast %59 : vector<1x32x32xf32> to vector<32x32xf32>
    %cst_25 = arith.constant dense<0.000000e+00> : vector<16x32xf32>
    %61 = tpu.matmul %44, %60, %cst_25 {dimension_numbers = #tpu.dot_dimension_numbers<[1], [0], [0], [1], [0, 0, 1, 1], [], []>} : vector<16x32xf32>, vector<32x32xf32>, vector<16x32xf32> -> vector<16x32xf32>
    %c4 = arith.constant 4 : index
    %c0_26 = arith.constant 0 : index
    %62 = vector.load %arg5[%c4, %c0_26] : memref<24x128xf32, #tpu.memory_space<vmem>>, vector<1x128xf32>
    %63 = vector.extract_strided_slice %62 {offsets = [0, 0], sizes = [1, 32], strides = [1, 1]} : vector<1x128xf32> to vector<1x32xf32>
    %64 = vector.broadcast %63 : vector<1x32xf32> to vector<16x32xf32>
    %65 = arith.addf %61, %64 : vector<16x32xf32>
    %cst_27 = arith.constant 0.000000e+00 : f32
    %66 = vector.broadcast %cst_27 : f32 to vector<16x32xf32>
    %67 = vector.broadcast %7 : vector<1x32xf32> to vector<16x32xf32>
    %68 = arith.mulf %51, %67 : vector<16x32xf32>
    %cst_28 = arith.constant dense<0.000000e+00> : vector<16x16xf32>
    %69 = tpu.matmul %68, %58, %cst_28 {dimension_numbers = #tpu.dot_dimension_numbers<[1], [1], [0], [0], [0, 0, 1, 0], [], []>} : vector<16x32xf32>, vector<16x32xf32>, vector<16x16xf32> -> vector<16x16xf32>
    %cst_29 = arith.constant 2.500000e-01 : f32
    %70 = vector.broadcast %cst_29 : f32 to vector<16x16xf32>
    %71 = arith.mulf %69, %70 : vector<16x16xf32>
    %72 = arith.addf %71, %15 : vector<16x16xf32>
    %cst_30 = arith.constant dense<0xFF800000> : vector<16xf32>
    %73 = vector.multi_reduction <maximumf>, %72, %cst_30 [1] : vector<16x16xf32> to vector<16xf32>
    %74 = vector.shape_cast %73 : vector<16xf32> to vector<16x1xf32>
    %75 = vector.broadcast %74 : vector<16x1xf32> to vector<16x16xf32>
    %76 = arith.subf %72, %75 : vector<16x16xf32>
    %77 = math.exp %76 : vector<16x16xf32>
    %cst_31 = arith.constant dense<0.000000e+00> : vector<16xf32>
    %78 = vector.multi_reduction <add>, %77, %cst_31 [1] : vector<16x16xf32> to vector<16xf32>
    %79 = vector.shape_cast %78 : vector<16xf32> to vector<16x1xf32>
    %80 = tpu.reciprocal %79 {approx = true} : vector<16x1xf32> -> vector<16x1xf32>
    %81 = vector.broadcast %80 : vector<16x1xf32> to vector<16x16xf32>
    %82 = arith.mulf %77, %81 : vector<16x16xf32>
    %83 = vector.broadcast %7 : vector<1x32xf32> to vector<16x32xf32>
    %84 = arith.mulf %65, %83 : vector<16x32xf32>
    %cst_32 = arith.constant dense<0.000000e+00> : vector<16x32xf32>
    %85 = tpu.matmul %82, %84, %cst_32 {dimension_numbers = #tpu.dot_dimension_numbers<[1], [0], [0], [1], [0, 0, 1, 1], [], []>} : vector<16x16xf32>, vector<16x32xf32>, vector<16x32xf32> -> vector<16x32xf32>
    %86 = arith.addf %66, %85 : vector<16x32xf32>
    %87 = vector.broadcast %14 : vector<1x32xf32> to vector<16x32xf32>
    %88 = arith.mulf %51, %87 : vector<16x32xf32>
    %cst_33 = arith.constant dense<0.000000e+00> : vector<16x16xf32>
    %89 = tpu.matmul %88, %58, %cst_33 {dimension_numbers = #tpu.dot_dimension_numbers<[1], [1], [0], [0], [0, 0, 1, 0], [], []>} : vector<16x32xf32>, vector<16x32xf32>, vector<16x16xf32> -> vector<16x16xf32>
    %cst_34 = arith.constant 2.500000e-01 : f32
    %90 = vector.broadcast %cst_34 : f32 to vector<16x16xf32>
    %91 = arith.mulf %89, %90 : vector<16x16xf32>
    %92 = arith.addf %91, %15 : vector<16x16xf32>
    %cst_35 = arith.constant dense<0xFF800000> : vector<16xf32>
    %93 = vector.multi_reduction <maximumf>, %92, %cst_35 [1] : vector<16x16xf32> to vector<16xf32>
    %94 = vector.shape_cast %93 : vector<16xf32> to vector<16x1xf32>
    %95 = vector.broadcast %94 : vector<16x1xf32> to vector<16x16xf32>
    %96 = arith.subf %92, %95 : vector<16x16xf32>
    %97 = math.exp %96 : vector<16x16xf32>
    %cst_36 = arith.constant dense<0.000000e+00> : vector<16xf32>
    %98 = vector.multi_reduction <add>, %97, %cst_36 [1] : vector<16x16xf32> to vector<16xf32>
    %99 = vector.shape_cast %98 : vector<16xf32> to vector<16x1xf32>
    %100 = tpu.reciprocal %99 {approx = true} : vector<16x1xf32> -> vector<16x1xf32>
    %101 = vector.broadcast %100 : vector<16x1xf32> to vector<16x16xf32>
    %102 = arith.mulf %97, %101 : vector<16x16xf32>
    %103 = vector.broadcast %14 : vector<1x32xf32> to vector<16x32xf32>
    %104 = arith.mulf %65, %103 : vector<16x32xf32>
    %cst_37 = arith.constant dense<0.000000e+00> : vector<16x32xf32>
    %105 = tpu.matmul %102, %104, %cst_37 {dimension_numbers = #tpu.dot_dimension_numbers<[1], [0], [0], [1], [0, 0, 1, 1], [], []>} : vector<16x16xf32>, vector<16x32xf32>, vector<16x32xf32> -> vector<16x32xf32>
    %106 = arith.addf %86, %105 : vector<16x32xf32>
    %c3_38 = arith.constant 3 : index
    %c0_39 = arith.constant 0 : index
    %c0_40 = arith.constant 0 : index
    %107 = vector.load %arg2[%c3_38, %c0_39, %c0_40] : memref<8x32x32xf32, #tpu.memory_space<vmem>>, vector<1x32x32xf32>
    %108 = vector.shape_cast %107 : vector<1x32x32xf32> to vector<32x32xf32>
    %cst_41 = arith.constant dense<0.000000e+00> : vector<16x32xf32>
    %109 = tpu.matmul %106, %108, %cst_41 {dimension_numbers = #tpu.dot_dimension_numbers<[1], [0], [0], [1], [0, 0, 1, 1], [], []>} : vector<16x32xf32>, vector<32x32xf32>, vector<16x32xf32> -> vector<16x32xf32>
    %c5 = arith.constant 5 : index
    %c0_42 = arith.constant 0 : index
    %110 = vector.load %arg5[%c5, %c0_42] : memref<24x128xf32, #tpu.memory_space<vmem>>, vector<1x128xf32>
    %111 = vector.extract_strided_slice %110 {offsets = [0, 0], sizes = [1, 32], strides = [1, 1]} : vector<1x128xf32> to vector<1x32xf32>
    %112 = vector.broadcast %111 : vector<1x32xf32> to vector<16x32xf32>
    %113 = arith.addf %109, %112 : vector<16x32xf32>
    %114 = arith.addf %44, %113 : vector<16x32xf32>
    %c6 = arith.constant 6 : index
    %c0_43 = arith.constant 0 : index
    %115 = vector.load %arg5[%c6, %c0_43] : memref<24x128xf32, #tpu.memory_space<vmem>>, vector<1x128xf32>
    %116 = vector.extract_strided_slice %115 {offsets = [0, 0], sizes = [1, 32], strides = [1, 1]} : vector<1x128xf32> to vector<1x32xf32>
    %c7 = arith.constant 7 : index
    %c0_44 = arith.constant 0 : index
    %117 = vector.load %arg5[%c7, %c0_44] : memref<24x128xf32, #tpu.memory_space<vmem>>, vector<1x128xf32>
    %118 = vector.extract_strided_slice %117 {offsets = [0, 0], sizes = [1, 32], strides = [1, 1]} : vector<1x128xf32> to vector<1x32xf32>
    %cst_45 = arith.constant dense<0.000000e+00> : vector<16xf32>
    %119 = vector.multi_reduction <add>, %114, %cst_45 [1] : vector<16x32xf32> to vector<16xf32>
    %120 = vector.shape_cast %119 : vector<16xf32> to vector<16x1xf32>
    %cst_46 = arith.constant 3.200000e+01 : f32
    %121 = vector.broadcast %cst_46 : f32 to vector<16x1xf32>
    %122 = arith.divf %120, %121 : vector<16x1xf32>
    %123 = arith.mulf %114, %114 : vector<16x32xf32>
    %cst_47 = arith.constant dense<0.000000e+00> : vector<16xf32>
    %124 = vector.multi_reduction <add>, %123, %cst_47 [1] : vector<16x32xf32> to vector<16xf32>
    %125 = vector.shape_cast %124 : vector<16xf32> to vector<16x1xf32>
    %cst_48 = arith.constant 3.200000e+01 : f32
    %126 = vector.broadcast %cst_48 : f32 to vector<16x1xf32>
    %127 = arith.divf %125, %126 : vector<16x1xf32>
    %128 = arith.mulf %122, %122 : vector<16x1xf32>
    %129 = arith.subf %127, %128 : vector<16x1xf32>
    %cst_49 = arith.constant 0.000000e+00 : f32
    %130 = vector.broadcast %cst_49 : f32 to vector<16x1xf32>
    %131 = arith.maximumf %129, %130 : vector<16x1xf32>
    %132 = vector.broadcast %122 : vector<16x1xf32> to vector<16x32xf32>
    %133 = arith.subf %114, %132 : vector<16x32xf32>
    %cst_50 = arith.constant 9.99999996E-13 : f32
    %134 = vector.broadcast %cst_50 : f32 to vector<16x1xf32>
    %135 = arith.addf %131, %134 : vector<16x1xf32>
    %136 = math.rsqrt %135 : vector<16x1xf32>
    %137 = vector.broadcast %136 : vector<16x1xf32> to vector<16x32xf32>
    %138 = arith.mulf %133, %137 : vector<16x32xf32>
    %139 = vector.broadcast %116 : vector<1x32xf32> to vector<16x32xf32>
    %140 = arith.mulf %138, %139 : vector<16x32xf32>
    %141 = vector.broadcast %118 : vector<1x32xf32> to vector<16x32xf32>
    %142 = arith.addf %140, %141 : vector<16x32xf32>
    %c0_51 = arith.constant 0 : index
    %c0_52 = arith.constant 0 : index
    %c0_53 = arith.constant 0 : index
    %143 = vector.load %arg3[%c0_51, %c0_52, %c0_53] : memref<2x32x64xf32, #tpu.memory_space<vmem>>, vector<1x32x64xf32>
    %144 = vector.shape_cast %143 : vector<1x32x64xf32> to vector<32x64xf32>
    %cst_54 = arith.constant dense<0.000000e+00> : vector<16x64xf32>
    %145 = tpu.matmul %142, %144, %cst_54 {dimension_numbers = #tpu.dot_dimension_numbers<[1], [0], [0], [1], [0, 0, 1, 1], [], []>} : vector<16x32xf32>, vector<32x64xf32>, vector<16x64xf32> -> vector<16x64xf32>
    %c8 = arith.constant 8 : index
    %c0_55 = arith.constant 0 : index
    %146 = vector.load %arg5[%c8, %c0_55] : memref<24x128xf32, #tpu.memory_space<vmem>>, vector<1x128xf32>
    %147 = vector.extract_strided_slice %146 {offsets = [0, 0], sizes = [1, 64], strides = [1, 1]} : vector<1x128xf32> to vector<1x64xf32>
    %148 = vector.broadcast %147 : vector<1x64xf32> to vector<16x64xf32>
    %149 = arith.addf %145, %148 : vector<16x64xf32>
    %cst_56 = arith.constant 5.000000e-01 : f32
    %150 = vector.broadcast %cst_56 : f32 to vector<16x64xf32>
    %151 = arith.mulf %150, %149 : vector<16x64xf32>
    %cst_57 = arith.constant 4.471500e-02 : f32
    %152 = vector.broadcast %cst_57 : f32 to vector<16x64xf32>
    %153 = arith.mulf %152, %149 : vector<16x64xf32>
    %154 = arith.mulf %153, %149 : vector<16x64xf32>
    %155 = arith.mulf %154, %149 : vector<16x64xf32>
    %156 = arith.addf %149, %155 : vector<16x64xf32>
    %cst_58 = arith.constant 0.797884583 : f32
    %157 = vector.broadcast %cst_58 : f32 to vector<16x64xf32>
    %158 = arith.mulf %157, %156 : vector<16x64xf32>
    %159 = math.tanh %158 : vector<16x64xf32>
    %cst_59 = arith.constant 1.000000e+00 : f32
    %160 = vector.broadcast %cst_59 : f32 to vector<16x64xf32>
    %161 = arith.addf %160, %159 : vector<16x64xf32>
    %162 = arith.mulf %151, %161 : vector<16x64xf32>
    %c0_60 = arith.constant 0 : index
    %c0_61 = arith.constant 0 : index
    %c0_62 = arith.constant 0 : index
    %163 = vector.load %arg4[%c0_60, %c0_61, %c0_62] : memref<2x64x32xf32, #tpu.memory_space<vmem>>, vector<1x64x32xf32>
    %164 = vector.shape_cast %163 : vector<1x64x32xf32> to vector<64x32xf32>
    %cst_63 = arith.constant dense<0.000000e+00> : vector<16x32xf32>
    %165 = tpu.matmul %162, %164, %cst_63 {dimension_numbers = #tpu.dot_dimension_numbers<[1], [0], [0], [1], [0, 0, 1, 1], [], []>} : vector<16x64xf32>, vector<64x32xf32>, vector<16x32xf32> -> vector<16x32xf32>
    %c9 = arith.constant 9 : index
    %c0_64 = arith.constant 0 : index
    %166 = vector.load %arg5[%c9, %c0_64] : memref<24x128xf32, #tpu.memory_space<vmem>>, vector<1x128xf32>
    %167 = vector.extract_strided_slice %166 {offsets = [0, 0], sizes = [1, 32], strides = [1, 1]} : vector<1x128xf32> to vector<1x32xf32>
    %168 = vector.broadcast %167 : vector<1x32xf32> to vector<16x32xf32>
    %169 = arith.addf %165, %168 : vector<16x32xf32>
    %170 = arith.addf %142, %169 : vector<16x32xf32>
    %c10 = arith.constant 10 : index
    %c0_65 = arith.constant 0 : index
    %171 = vector.load %arg5[%c10, %c0_65] : memref<24x128xf32, #tpu.memory_space<vmem>>, vector<1x128xf32>
    %172 = vector.extract_strided_slice %171 {offsets = [0, 0], sizes = [1, 32], strides = [1, 1]} : vector<1x128xf32> to vector<1x32xf32>
    %c11 = arith.constant 11 : index
    %c0_66 = arith.constant 0 : index
    %173 = vector.load %arg5[%c11, %c0_66] : memref<24x128xf32, #tpu.memory_space<vmem>>, vector<1x128xf32>
    %174 = vector.extract_strided_slice %173 {offsets = [0, 0], sizes = [1, 32], strides = [1, 1]} : vector<1x128xf32> to vector<1x32xf32>
    %cst_67 = arith.constant dense<0.000000e+00> : vector<16xf32>
    %175 = vector.multi_reduction <add>, %170, %cst_67 [1] : vector<16x32xf32> to vector<16xf32>
    %176 = vector.shape_cast %175 : vector<16xf32> to vector<16x1xf32>
    %cst_68 = arith.constant 3.200000e+01 : f32
    %177 = vector.broadcast %cst_68 : f32 to vector<16x1xf32>
    %178 = arith.divf %176, %177 : vector<16x1xf32>
    %179 = arith.mulf %170, %170 : vector<16x32xf32>
    %cst_69 = arith.constant dense<0.000000e+00> : vector<16xf32>
    %180 = vector.multi_reduction <add>, %179, %cst_69 [1] : vector<16x32xf32> to vector<16xf32>
    %181 = vector.shape_cast %180 : vector<16xf32> to vector<16x1xf32>
    %cst_70 = arith.constant 3.200000e+01 : f32
    %182 = vector.broadcast %cst_70 : f32 to vector<16x1xf32>
    %183 = arith.divf %181, %182 : vector<16x1xf32>
    %184 = arith.mulf %178, %178 : vector<16x1xf32>
    %185 = arith.subf %183, %184 : vector<16x1xf32>
    %cst_71 = arith.constant 0.000000e+00 : f32
    %186 = vector.broadcast %cst_71 : f32 to vector<16x1xf32>
    %187 = arith.maximumf %185, %186 : vector<16x1xf32>
    %188 = vector.broadcast %178 : vector<16x1xf32> to vector<16x32xf32>
    %189 = arith.subf %170, %188 : vector<16x32xf32>
    %cst_72 = arith.constant 9.99999996E-13 : f32
    %190 = vector.broadcast %cst_72 : f32 to vector<16x1xf32>
    %191 = arith.addf %187, %190 : vector<16x1xf32>
    %192 = math.rsqrt %191 : vector<16x1xf32>
    %193 = vector.broadcast %192 : vector<16x1xf32> to vector<16x32xf32>
    %194 = arith.mulf %189, %193 : vector<16x32xf32>
    %195 = vector.broadcast %172 : vector<1x32xf32> to vector<16x32xf32>
    %196 = arith.mulf %194, %195 : vector<16x32xf32>
    %197 = vector.broadcast %174 : vector<1x32xf32> to vector<16x32xf32>
    %198 = arith.addf %196, %197 : vector<16x32xf32>
    %c4_73 = arith.constant 4 : index
    %c0_74 = arith.constant 0 : index
    %c0_75 = arith.constant 0 : index
    %199 = vector.load %arg2[%c4_73, %c0_74, %c0_75] : memref<8x32x32xf32, #tpu.memory_space<vmem>>, vector<1x32x32xf32>
    %200 = vector.shape_cast %199 : vector<1x32x32xf32> to vector<32x32xf32>
    %cst_76 = arith.constant dense<0.000000e+00> : vector<16x32xf32>
    %201 = tpu.matmul %198, %200, %cst_76 {dimension_numbers = #tpu.dot_dimension_numbers<[1], [0], [0], [1], [0, 0, 1, 1], [], []>} : vector<16x32xf32>, vector<32x32xf32>, vector<16x32xf32> -> vector<16x32xf32>
    %c12 = arith.constant 12 : index
    %c0_77 = arith.constant 0 : index
    %202 = vector.load %arg5[%c12, %c0_77] : memref<24x128xf32, #tpu.memory_space<vmem>>, vector<1x128xf32>
    %203 = vector.extract_strided_slice %202 {offsets = [0, 0], sizes = [1, 32], strides = [1, 1]} : vector<1x128xf32> to vector<1x32xf32>
    %204 = vector.broadcast %203 : vector<1x32xf32> to vector<16x32xf32>
    %205 = arith.addf %201, %204 : vector<16x32xf32>
    %c5_78 = arith.constant 5 : index
    %c0_79 = arith.constant 0 : index
    %c0_80 = arith.constant 0 : index
    %206 = vector.load %arg2[%c5_78, %c0_79, %c0_80] : memref<8x32x32xf32, #tpu.memory_space<vmem>>, vector<1x32x32xf32>
    %207 = vector.shape_cast %206 : vector<1x32x32xf32> to vector<32x32xf32>
    %cst_81 = arith.constant dense<0.000000e+00> : vector<16x32xf32>
    %208 = tpu.matmul %198, %207, %cst_81 {dimension_numbers = #tpu.dot_dimension_numbers<[1], [0], [0], [1], [0, 0, 1, 1], [], []>} : vector<16x32xf32>, vector<32x32xf32>, vector<16x32xf32> -> vector<16x32xf32>
    %c13 = arith.constant 13 : index
    %c0_82 = arith.constant 0 : index
    %209 = vector.load %arg5[%c13, %c0_82] : memref<24x128xf32, #tpu.memory_space<vmem>>, vector<1x128xf32>
    %210 = vector.extract_strided_slice %209 {offsets = [0, 0], sizes = [1, 32], strides = [1, 1]} : vector<1x128xf32> to vector<1x32xf32>
    %211 = vector.broadcast %210 : vector<1x32xf32> to vector<16x32xf32>
    %212 = arith.addf %208, %211 : vector<16x32xf32>
    %c6_83 = arith.constant 6 : index
    %c0_84 = arith.constant 0 : index
    %c0_85 = arith.constant 0 : index
    %213 = vector.load %arg2[%c6_83, %c0_84, %c0_85] : memref<8x32x32xf32, #tpu.memory_space<vmem>>, vector<1x32x32xf32>
    %214 = vector.shape_cast %213 : vector<1x32x32xf32> to vector<32x32xf32>
    %cst_86 = arith.constant dense<0.000000e+00> : vector<16x32xf32>
    %215 = tpu.matmul %198, %214, %cst_86 {dimension_numbers = #tpu.dot_dimension_numbers<[1], [0], [0], [1], [0, 0, 1, 1], [], []>} : vector<16x32xf32>, vector<32x32xf32>, vector<16x32xf32> -> vector<16x32xf32>
    %c14 = arith.constant 14 : index
    %c0_87 = arith.constant 0 : index
    %216 = vector.load %arg5[%c14, %c0_87] : memref<24x128xf32, #tpu.memory_space<vmem>>, vector<1x128xf32>
    %217 = vector.extract_strided_slice %216 {offsets = [0, 0], sizes = [1, 32], strides = [1, 1]} : vector<1x128xf32> to vector<1x32xf32>
    %218 = vector.broadcast %217 : vector<1x32xf32> to vector<16x32xf32>
    %219 = arith.addf %215, %218 : vector<16x32xf32>
    %cst_88 = arith.constant 0.000000e+00 : f32
    %220 = vector.broadcast %cst_88 : f32 to vector<16x32xf32>
    %221 = vector.broadcast %7 : vector<1x32xf32> to vector<16x32xf32>
    %222 = arith.mulf %205, %221 : vector<16x32xf32>
    %cst_89 = arith.constant dense<0.000000e+00> : vector<16x16xf32>
    %223 = tpu.matmul %222, %212, %cst_89 {dimension_numbers = #tpu.dot_dimension_numbers<[1], [1], [0], [0], [0, 0, 1, 0], [], []>} : vector<16x32xf32>, vector<16x32xf32>, vector<16x16xf32> -> vector<16x16xf32>
    %cst_90 = arith.constant 2.500000e-01 : f32
    %224 = vector.broadcast %cst_90 : f32 to vector<16x16xf32>
    %225 = arith.mulf %223, %224 : vector<16x16xf32>
    %226 = arith.addf %225, %15 : vector<16x16xf32>
    %cst_91 = arith.constant dense<0xFF800000> : vector<16xf32>
    %227 = vector.multi_reduction <maximumf>, %226, %cst_91 [1] : vector<16x16xf32> to vector<16xf32>
    %228 = vector.shape_cast %227 : vector<16xf32> to vector<16x1xf32>
    %229 = vector.broadcast %228 : vector<16x1xf32> to vector<16x16xf32>
    %230 = arith.subf %226, %229 : vector<16x16xf32>
    %231 = math.exp %230 : vector<16x16xf32>
    %cst_92 = arith.constant dense<0.000000e+00> : vector<16xf32>
    %232 = vector.multi_reduction <add>, %231, %cst_92 [1] : vector<16x16xf32> to vector<16xf32>
    %233 = vector.shape_cast %232 : vector<16xf32> to vector<16x1xf32>
    %234 = tpu.reciprocal %233 {approx = true} : vector<16x1xf32> -> vector<16x1xf32>
    %235 = vector.broadcast %234 : vector<16x1xf32> to vector<16x16xf32>
    %236 = arith.mulf %231, %235 : vector<16x16xf32>
    %237 = vector.broadcast %7 : vector<1x32xf32> to vector<16x32xf32>
    %238 = arith.mulf %219, %237 : vector<16x32xf32>
    %cst_93 = arith.constant dense<0.000000e+00> : vector<16x32xf32>
    %239 = tpu.matmul %236, %238, %cst_93 {dimension_numbers = #tpu.dot_dimension_numbers<[1], [0], [0], [1], [0, 0, 1, 1], [], []>} : vector<16x16xf32>, vector<16x32xf32>, vector<16x32xf32> -> vector<16x32xf32>
    %240 = arith.addf %220, %239 : vector<16x32xf32>
    %241 = vector.broadcast %14 : vector<1x32xf32> to vector<16x32xf32>
    %242 = arith.mulf %205, %241 : vector<16x32xf32>
    %cst_94 = arith.constant dense<0.000000e+00> : vector<16x16xf32>
    %243 = tpu.matmul %242, %212, %cst_94 {dimension_numbers = #tpu.dot_dimension_numbers<[1], [1], [0], [0], [0, 0, 1, 0], [], []>} : vector<16x32xf32>, vector<16x32xf32>, vector<16x16xf32> -> vector<16x16xf32>
    %cst_95 = arith.constant 2.500000e-01 : f32
    %244 = vector.broadcast %cst_95 : f32 to vector<16x16xf32>
    %245 = arith.mulf %243, %244 : vector<16x16xf32>
    %246 = arith.addf %245, %15 : vector<16x16xf32>
    %cst_96 = arith.constant dense<0xFF800000> : vector<16xf32>
    %247 = vector.multi_reduction <maximumf>, %246, %cst_96 [1] : vector<16x16xf32> to vector<16xf32>
    %248 = vector.shape_cast %247 : vector<16xf32> to vector<16x1xf32>
    %249 = vector.broadcast %248 : vector<16x1xf32> to vector<16x16xf32>
    %250 = arith.subf %246, %249 : vector<16x16xf32>
    %251 = math.exp %250 : vector<16x16xf32>
    %cst_97 = arith.constant dense<0.000000e+00> : vector<16xf32>
    %252 = vector.multi_reduction <add>, %251, %cst_97 [1] : vector<16x16xf32> to vector<16xf32>
    %253 = vector.shape_cast %252 : vector<16xf32> to vector<16x1xf32>
    %254 = tpu.reciprocal %253 {approx = true} : vector<16x1xf32> -> vector<16x1xf32>
    %255 = vector.broadcast %254 : vector<16x1xf32> to vector<16x16xf32>
    %256 = arith.mulf %251, %255 : vector<16x16xf32>
    %257 = vector.broadcast %14 : vector<1x32xf32> to vector<16x32xf32>
    %258 = arith.mulf %219, %257 : vector<16x32xf32>
    %cst_98 = arith.constant dense<0.000000e+00> : vector<16x32xf32>
    %259 = tpu.matmul %256, %258, %cst_98 {dimension_numbers = #tpu.dot_dimension_numbers<[1], [0], [0], [1], [0, 0, 1, 1], [], []>} : vector<16x16xf32>, vector<16x32xf32>, vector<16x32xf32> -> vector<16x32xf32>
    %260 = arith.addf %240, %259 : vector<16x32xf32>
    %c7_99 = arith.constant 7 : index
    %c0_100 = arith.constant 0 : index
    %c0_101 = arith.constant 0 : index
    %261 = vector.load %arg2[%c7_99, %c0_100, %c0_101] : memref<8x32x32xf32, #tpu.memory_space<vmem>>, vector<1x32x32xf32>
    %262 = vector.shape_cast %261 : vector<1x32x32xf32> to vector<32x32xf32>
    %cst_102 = arith.constant dense<0.000000e+00> : vector<16x32xf32>
    %263 = tpu.matmul %260, %262, %cst_102 {dimension_numbers = #tpu.dot_dimension_numbers<[1], [0], [0], [1], [0, 0, 1, 1], [], []>} : vector<16x32xf32>, vector<32x32xf32>, vector<16x32xf32> -> vector<16x32xf32>
    %c15 = arith.constant 15 : index
    %c0_103 = arith.constant 0 : index
    %264 = vector.load %arg5[%c15, %c0_103] : memref<24x128xf32, #tpu.memory_space<vmem>>, vector<1x128xf32>
    %265 = vector.extract_strided_slice %264 {offsets = [0, 0], sizes = [1, 32], strides = [1, 1]} : vector<1x128xf32> to vector<1x32xf32>
    %266 = vector.broadcast %265 : vector<1x32xf32> to vector<16x32xf32>
    %267 = arith.addf %263, %266 : vector<16x32xf32>
    %268 = arith.addf %198, %267 : vector<16x32xf32>
    %c16 = arith.constant 16 : index
    %c0_104 = arith.constant 0 : index
    %269 = vector.load %arg5[%c16, %c0_104] : memref<24x128xf32, #tpu.memory_space<vmem>>, vector<1x128xf32>
    %270 = vector.extract_strided_slice %269 {offsets = [0, 0], sizes = [1, 32], strides = [1, 1]} : vector<1x128xf32> to vector<1x32xf32>
    %c17 = arith.constant 17 : index
    %c0_105 = arith.constant 0 : index
    %271 = vector.load %arg5[%c17, %c0_105] : memref<24x128xf32, #tpu.memory_space<vmem>>, vector<1x128xf32>
    %272 = vector.extract_strided_slice %271 {offsets = [0, 0], sizes = [1, 32], strides = [1, 1]} : vector<1x128xf32> to vector<1x32xf32>
    %cst_106 = arith.constant dense<0.000000e+00> : vector<16xf32>
    %273 = vector.multi_reduction <add>, %268, %cst_106 [1] : vector<16x32xf32> to vector<16xf32>
    %274 = vector.shape_cast %273 : vector<16xf32> to vector<16x1xf32>
    %cst_107 = arith.constant 3.200000e+01 : f32
    %275 = vector.broadcast %cst_107 : f32 to vector<16x1xf32>
    %276 = arith.divf %274, %275 : vector<16x1xf32>
    %277 = arith.mulf %268, %268 : vector<16x32xf32>
    %cst_108 = arith.constant dense<0.000000e+00> : vector<16xf32>
    %278 = vector.multi_reduction <add>, %277, %cst_108 [1] : vector<16x32xf32> to vector<16xf32>
    %279 = vector.shape_cast %278 : vector<16xf32> to vector<16x1xf32>
    %cst_109 = arith.constant 3.200000e+01 : f32
    %280 = vector.broadcast %cst_109 : f32 to vector<16x1xf32>
    %281 = arith.divf %279, %280 : vector<16x1xf32>
    %282 = arith.mulf %276, %276 : vector<16x1xf32>
    %283 = arith.subf %281, %282 : vector<16x1xf32>
    %cst_110 = arith.constant 0.000000e+00 : f32
    %284 = vector.broadcast %cst_110 : f32 to vector<16x1xf32>
    %285 = arith.maximumf %283, %284 : vector<16x1xf32>
    %286 = vector.broadcast %276 : vector<16x1xf32> to vector<16x32xf32>
    %287 = arith.subf %268, %286 : vector<16x32xf32>
    %cst_111 = arith.constant 9.99999996E-13 : f32
    %288 = vector.broadcast %cst_111 : f32 to vector<16x1xf32>
    %289 = arith.addf %285, %288 : vector<16x1xf32>
    %290 = math.rsqrt %289 : vector<16x1xf32>
    %291 = vector.broadcast %290 : vector<16x1xf32> to vector<16x32xf32>
    %292 = arith.mulf %287, %291 : vector<16x32xf32>
    %293 = vector.broadcast %270 : vector<1x32xf32> to vector<16x32xf32>
    %294 = arith.mulf %292, %293 : vector<16x32xf32>
    %295 = vector.broadcast %272 : vector<1x32xf32> to vector<16x32xf32>
    %296 = arith.addf %294, %295 : vector<16x32xf32>
    %c1_112 = arith.constant 1 : index
    %c0_113 = arith.constant 0 : index
    %c0_114 = arith.constant 0 : index
    %297 = vector.load %arg3[%c1_112, %c0_113, %c0_114] : memref<2x32x64xf32, #tpu.memory_space<vmem>>, vector<1x32x64xf32>
    %298 = vector.shape_cast %297 : vector<1x32x64xf32> to vector<32x64xf32>
    %cst_115 = arith.constant dense<0.000000e+00> : vector<16x64xf32>
    %299 = tpu.matmul %296, %298, %cst_115 {dimension_numbers = #tpu.dot_dimension_numbers<[1], [0], [0], [1], [0, 0, 1, 1], [], []>} : vector<16x32xf32>, vector<32x64xf32>, vector<16x64xf32> -> vector<16x64xf32>
    %c18 = arith.constant 18 : index
    %c0_116 = arith.constant 0 : index
    %300 = vector.load %arg5[%c18, %c0_116] : memref<24x128xf32, #tpu.memory_space<vmem>>, vector<1x128xf32>
    %301 = vector.extract_strided_slice %300 {offsets = [0, 0], sizes = [1, 64], strides = [1, 1]} : vector<1x128xf32> to vector<1x64xf32>
    %302 = vector.broadcast %301 : vector<1x64xf32> to vector<16x64xf32>
    %303 = arith.addf %299, %302 : vector<16x64xf32>
    %cst_117 = arith.constant 5.000000e-01 : f32
    %304 = vector.broadcast %cst_117 : f32 to vector<16x64xf32>
    %305 = arith.mulf %304, %303 : vector<16x64xf32>
    %cst_118 = arith.constant 4.471500e-02 : f32
    %306 = vector.broadcast %cst_118 : f32 to vector<16x64xf32>
    %307 = arith.mulf %306, %303 : vector<16x64xf32>
    %308 = arith.mulf %307, %303 : vector<16x64xf32>
    %309 = arith.mulf %308, %303 : vector<16x64xf32>
    %310 = arith.addf %303, %309 : vector<16x64xf32>
    %cst_119 = arith.constant 0.797884583 : f32
    %311 = vector.broadcast %cst_119 : f32 to vector<16x64xf32>
    %312 = arith.mulf %311, %310 : vector<16x64xf32>
    %313 = math.tanh %312 : vector<16x64xf32>
    %cst_120 = arith.constant 1.000000e+00 : f32
    %314 = vector.broadcast %cst_120 : f32 to vector<16x64xf32>
    %315 = arith.addf %314, %313 : vector<16x64xf32>
    %316 = arith.mulf %305, %315 : vector<16x64xf32>
    %c1_121 = arith.constant 1 : index
    %c0_122 = arith.constant 0 : index
    %c0_123 = arith.constant 0 : index
    %317 = vector.load %arg4[%c1_121, %c0_122, %c0_123] : memref<2x64x32xf32, #tpu.memory_space<vmem>>, vector<1x64x32xf32>
    %318 = vector.shape_cast %317 : vector<1x64x32xf32> to vector<64x32xf32>
    %cst_124 = arith.constant dense<0.000000e+00> : vector<16x32xf32>
    %319 = tpu.matmul %316, %318, %cst_124 {dimension_numbers = #tpu.dot_dimension_numbers<[1], [0], [0], [1], [0, 0, 1, 1], [], []>} : vector<16x64xf32>, vector<64x32xf32>, vector<16x32xf32> -> vector<16x32xf32>
    %c19 = arith.constant 19 : index
    %c0_125 = arith.constant 0 : index
    %320 = vector.load %arg5[%c19, %c0_125] : memref<24x128xf32, #tpu.memory_space<vmem>>, vector<1x128xf32>
    %321 = vector.extract_strided_slice %320 {offsets = [0, 0], sizes = [1, 32], strides = [1, 1]} : vector<1x128xf32> to vector<1x32xf32>
    %322 = vector.broadcast %321 : vector<1x32xf32> to vector<16x32xf32>
    %323 = arith.addf %319, %322 : vector<16x32xf32>
    %324 = arith.addf %296, %323 : vector<16x32xf32>
    %c20 = arith.constant 20 : index
    %c0_126 = arith.constant 0 : index
    %325 = vector.load %arg5[%c20, %c0_126] : memref<24x128xf32, #tpu.memory_space<vmem>>, vector<1x128xf32>
    %326 = vector.extract_strided_slice %325 {offsets = [0, 0], sizes = [1, 32], strides = [1, 1]} : vector<1x128xf32> to vector<1x32xf32>
    %c21 = arith.constant 21 : index
    %c0_127 = arith.constant 0 : index
    %327 = vector.load %arg5[%c21, %c0_127] : memref<24x128xf32, #tpu.memory_space<vmem>>, vector<1x128xf32>
    %328 = vector.extract_strided_slice %327 {offsets = [0, 0], sizes = [1, 32], strides = [1, 1]} : vector<1x128xf32> to vector<1x32xf32>
    %cst_128 = arith.constant dense<0.000000e+00> : vector<16xf32>
    %329 = vector.multi_reduction <add>, %324, %cst_128 [1] : vector<16x32xf32> to vector<16xf32>
    %330 = vector.shape_cast %329 : vector<16xf32> to vector<16x1xf32>
    %cst_129 = arith.constant 3.200000e+01 : f32
    %331 = vector.broadcast %cst_129 : f32 to vector<16x1xf32>
    %332 = arith.divf %330, %331 : vector<16x1xf32>
    %333 = arith.mulf %324, %324 : vector<16x32xf32>
    %cst_130 = arith.constant dense<0.000000e+00> : vector<16xf32>
    %334 = vector.multi_reduction <add>, %333, %cst_130 [1] : vector<16x32xf32> to vector<16xf32>
    %335 = vector.shape_cast %334 : vector<16xf32> to vector<16x1xf32>
    %cst_131 = arith.constant 3.200000e+01 : f32
    %336 = vector.broadcast %cst_131 : f32 to vector<16x1xf32>
    %337 = arith.divf %335, %336 : vector<16x1xf32>
    %338 = arith.mulf %332, %332 : vector<16x1xf32>
    %339 = arith.subf %337, %338 : vector<16x1xf32>
    %cst_132 = arith.constant 0.000000e+00 : f32
    %340 = vector.broadcast %cst_132 : f32 to vector<16x1xf32>
    %341 = arith.maximumf %339, %340 : vector<16x1xf32>
    %342 = vector.broadcast %332 : vector<16x1xf32> to vector<16x32xf32>
    %343 = arith.subf %324, %342 : vector<16x32xf32>
    %cst_133 = arith.constant 9.99999996E-13 : f32
    %344 = vector.broadcast %cst_133 : f32 to vector<16x1xf32>
    %345 = arith.addf %341, %344 : vector<16x1xf32>
    %346 = math.rsqrt %345 : vector<16x1xf32>
    %347 = vector.broadcast %346 : vector<16x1xf32> to vector<16x32xf32>
    %348 = arith.mulf %343, %347 : vector<16x32xf32>
    %349 = vector.broadcast %326 : vector<1x32xf32> to vector<16x32xf32>
    %350 = arith.mulf %348, %349 : vector<16x32xf32>
    %351 = vector.broadcast %328 : vector<1x32xf32> to vector<16x32xf32>
    %352 = arith.addf %350, %351 : vector<16x32xf32>
    %c22 = arith.constant 22 : index
    %c0_134 = arith.constant 0 : index
    %353 = vector.load %arg5[%c22, %c0_134] : memref<24x128xf32, #tpu.memory_space<vmem>>, vector<1x128xf32>
    %354 = vector.extract_strided_slice %353 {offsets = [0, 0], sizes = [1, 32], strides = [1, 1]} : vector<1x128xf32> to vector<1x32xf32>
    %c23 = arith.constant 23 : index
    %c0_135 = arith.constant 0 : index
    %355 = vector.load %arg5[%c23, %c0_135] : memref<24x128xf32, #tpu.memory_space<vmem>>, vector<1x128xf32>
    %c0_136 = arith.constant 0 : index
    %c0_137 = arith.constant 0 : index
    %356 = vector.load %arg6[%c0_136, %c0_137] : memref<32x32xf32, #tpu.memory_space<vmem>>, vector<32x32xf32>
    %cst_138 = arith.constant dense<0.000000e+00> : vector<16x32xf32>
    %357 = tpu.matmul %352, %356, %cst_138 {dimension_numbers = #tpu.dot_dimension_numbers<[1], [0], [0], [1], [0, 0, 1, 1], [], []>} : vector<16x32xf32>, vector<32x32xf32>, vector<16x32xf32> -> vector<16x32xf32>
    %358 = vector.broadcast %354 : vector<1x32xf32> to vector<16x32xf32>
    %359 = arith.addf %357, %358 : vector<16x32xf32>
    %360 = math.tanh %359 : vector<16x32xf32>
    %c0_139 = arith.constant 0 : index
    %c0_140 = arith.constant 0 : index
    %361 = vector.load %arg7[%c0_139, %c0_140] : memref<32x128xf32, #tpu.memory_space<vmem>>, vector<32x128xf32>
    %cst_141 = arith.constant dense<0.000000e+00> : vector<16x128xf32>
    %362 = tpu.matmul %360, %361, %cst_141 {dimension_numbers = #tpu.dot_dimension_numbers<[1], [0], [0], [1], [0, 0, 1, 1], [], []>} : vector<16x32xf32>, vector<32x128xf32>, vector<16x128xf32> -> vector<16x128xf32>
    %363 = vector.broadcast %355 : vector<1x128xf32> to vector<16x128xf32>
    %364 = arith.addf %362, %363 : vector<16x128xf32>
    %c0_142 = arith.constant 0 : index
    %c0_143 = arith.constant 0 : index
    %365 = vector.load %arg8[%c0_142, %c0_143] : memref<16x128xf32, #tpu.memory_space<vmem>>, vector<16x128xf32>
    tpu.vector_store %arg8[%c0_142, %c0_143], %364 {strides = array<i32>} : memref<16x128xf32, #tpu.memory_space<vmem>>, vector<16x128xf32>,
    return
  }
}

</mosaic_0001>

<llo_original>
// kernel: tpu_custom_call.1
$region0: #{tpu_custom_call.1}
  #allocation0 [shape = 'u32[]', space=smem, size = 0x4, offset = 0x4, fixed_abs, tag = 'smem constant byte address 0x4 - core index']
  #allocation1 [shape = 'u32[144,128]{1,0:T(1,128)}', space=vmem, size = 0x12000, scoped, tag = 'internal scratch']
  %s0 = inlined_call_operand.vmem [shape: f32[16,32], index: 0, kind: input, shape index: {}]
  %s1 = inlined_call_operand.vmem [shape: f32[16,16], index: 1, kind: input, shape index: {}]
  %s2 = inlined_call_operand.hbm [shape: f32[8,32,32], index: 2, kind: input, shape index: {}]
  %s3 = inlined_call_operand.vmem [shape: f32[2,32,64], index: 3, kind: input, shape index: {}]
  %s4 = inlined_call_operand.vmem [shape: f32[2,64,32], index: 4, kind: input, shape index: {}]
  %s5 = inlined_call_operand.vmem [shape: f32[24,128], index: 5, kind: input, shape index: {}]
  %s6 = inlined_call_operand.vmem [shape: f32[32,32], index: 6, kind: input, shape index: {}]
  %s7 = inlined_call_operand.vmem [shape: f32[32,128], index: 7, kind: input, shape index: {}]
  %s8 = inlined_call_operand.hbm [shape: f32[16,128], index: 8, kind: output, shape index: {}]
  %s9 = sld [smem:[#allocation0]]
  $region46: #{tpu_custom_call.1} parent=0
    _
  %s11 = ssub.s32 1, %s9
  %s12 = scalar_select 0, %s11, %s9
  $region1: #{tpu_custom_call.1} parent=0
    #allocation2 [shape = 'u8[131072]{0}', space=vmem, size = 0x20000, scoped, tag = 'input window, operand 2, single buffered']
    #allocation3 [shape = 's32[1]{0}', space=sflag, size = 0x4, scoped, tag = 'scoped memory for tpu_custom_call.1']
    #allocation4 [shape = 's32[1]{0}', space=sflag, size = 0x4, scoped, tag = 'scoped memory for tpu_custom_call.1']
    #allocation5 [shape = 'u8[8192]{0}', space=vmem, size = 0x2000, scoped, tag = 'output window, operand 0, single buffered']
    %13 = vsyncpa [#allocation3], 0
    %14 = vsyncpa [#allocation4], 0
    // Predicated region
    $region2: #{tpu_custom_call.1} parent=1 // pred_check
      _
    $region3: #{tpu_custom_call.1} parent=1 // pred_check_branch
      %16 = sbr.rel (0) target = $region5
    $region4: #{tpu_custom_call.1} parent=1 // pred_region
      _
    $region5: #{tpu_custom_call.1} parent=1 // pred_fallthru
      _
    // Predicated region
    $region6: #{tpu_custom_call.1} parent=1 // pred_check
      _
    $region7: #{tpu_custom_call.1} parent=1 // pred_check_branch
      %18 = sbr.rel (0) target = $region9
    $region8: #{tpu_custom_call.1} parent=1 // pred_region
      _
    $region9: #{tpu_custom_call.1} parent=1 // pred_fallthru
      _
    // Predicated region
    $region10: #{tpu_custom_call.1} parent=1 // pred_check
      _
    $region11: #{tpu_custom_call.1} parent=1 // pred_check_branch
      %20 = sbr.rel (0) target = $region13
    $region12: #{tpu_custom_call.1} parent=1 // pred_region
      %s22 = ssub.s32 4096, 4096
      %23 = vsyncadd [#allocation3], %s22
      %s24 = sshll.u32 [#allocation2], 4
      %s25 = int_to_ptr.vmem [resolvable:$true] %s24
      %30 = dma.hbm_to_vmem [thread:$0]  %s2, 4096, %s25, [#allocation3], 128, 128, 8
    $region13: #{tpu_custom_call.1} parent=1 // pred_fallthru
      _
    // Predicated region
    $region14: #{tpu_custom_call.1} parent=1 // pred_check
      _
    $region15: #{tpu_custom_call.1} parent=1 // pred_check_branch
      %32 = sbr.rel (0) target = $region17
    $region16: #{tpu_custom_call.1} parent=1 // pred_region
      _
    $region17: #{tpu_custom_call.1} parent=1 // pred_fallthru
      _
    // Predicated region
    $region18: #{tpu_custom_call.1} parent=1 // pred_check
      _
    $region19: #{tpu_custom_call.1} parent=1 // pred_check_branch
      %34 = sbr.rel (0) target = $region21
    $region20: #{tpu_custom_call.1} parent=1 // pred_region
      _
    $region21: #{tpu_custom_call.1} parent=1 // pred_fallthru
      _
    // Predicated region
    $region22: #{tpu_custom_call.1} parent=1 // pred_check
      _
    $region23: #{tpu_custom_call.1} parent=1 // pred_check_branch
      %36 = sbr.rel (0) target = $region25
    $region24: #{tpu_custom_call.1} parent=1 // pred_region
      _
    $region25: #{tpu_custom_call.1} parent=1 // pred_fallthru
      _
    // Predicated region
    $region26: #{tpu_custom_call.1} parent=1 // pred_check
      _
    $region27: #{tpu_custom_call.1} parent=1 // pred_check_branch
      %38 = sbr.rel (0) target = $region29
    $region28: #{tpu_custom_call.1} parent=1 // pred_region
      _
    $region29: #{tpu_custom_call.1} parent=1 // pred_fallthru
      _
    // Predicated region
    $region30: #{tpu_custom_call.1} parent=1 // pred_check
      _
    $region31: #{tpu_custom_call.1} parent=1 // pred_check_branch
      %40 = sbr.rel (0) target = $region33
    $region32: #{tpu_custom_call.1} parent=1 // pred_region
      _
    $region33: #{tpu_custom_call.1} parent=1 // pred_fallthru
      _
    // Predicated region
    $region34: #{tpu_custom_call.1} parent=1 // pred_check
      _
    $region35: #{tpu_custom_call.1} parent=1 // pred_check_branch
      %42 = sbr.rel (0) target = $region37
    $region36: #{tpu_custom_call.1} parent=1 // pred_region
      %43 = dma.done [#allocation3], 4096
    $region37: #{tpu_custom_call.1} parent=1 // pred_fallthru
      _
    %v44 = vlaneseq
    %v45 = vand.u32 %v44, 127
    %vm46 = vcmp.ge.s32.totalorder %v45, 0
    %vm47 = vcmp.lt.s32.totalorder %v45, 16
    %vm48 = vmand %vm46, %vm47
    %v49 = vsel %vm48, 1, 0
    %v50 = vcvt.s32.f32 %v49
    %vm51 = vcmp.ge.s32.totalorder %v45, 16
    %vm52 = vcmp.lt.s32.totalorder %v45, 32
    %vm53 = vmand %vm51, %vm52
    %v54 = vsel %vm53, 1, 0
    %v55 = vcvt.s32.f32 %v54
    %v56 = vld [vmem:[%s1] sm:$0xff]
    %v57 = vld [vmem:[%s1 + $0x8] sm:$0xff]
    %v58 = vld [vmem:[%s0] sm:$0xff]
    %v59 = vld [vmem:[%s0 + $0x8] sm:$0xff]
    %v60 = vld [vmem:[%s5] sm:$0x1]
    %v61 = vld [vmem:[%s5 + $0x1] sm:$0x1]
    %vm62 = vcmask 261120
    %v63 = vsel %vm62, %v58, 0.0
    %64 = vadd.xlane.f32.xlu0 %v63
    %v65 = vpop.xlane.xlu0 %64
    %v66 = vsel %vm62, %v59, 0.0
    %67 = vadd.xlane.f32.xlu0 %v66
    %v68 = vpop.xlane.xlu0 %67
    %v69 = vrcp.pop 32.0
    %v70 = vmul.f32 %v65, %v69
    %v71 = vmul.f32 %v68, %v69
    %v72 = vmul.f32 %v58, %v58
    %v73 = vmul.f32 %v59, %v59
    %v74 = vsel %vm62, %v72, 0.0
    %75 = vadd.xlane.f32.xlu0 %v74
    %v76 = vpop.xlane.xlu0 %75
    %v77 = vsel %vm62, %v73, 0.0
    %78 = vadd.xlane.f32.xlu0 %v77
    %v79 = vpop.xlane.xlu0 %78
    %v80 = vmul.f32 %v76, %v69
    %v81 = vmul.f32 %v79, %v69
    %v82 = vmul.f32 %v70, %v70
    %v83 = vmul.f32 %v71, %v71
    %v84 = vsub.f32 %v80, %v82
    %v85 = vsub.f32 %v81, %v83
    %v86 = vmax.f32 %v84, 0.0
    %v87 = vmax.f32 %v85, 0.0
    %v88 = vsub.f32 %v58, %v70
    %v89 = vsub.f32 %v59, %v71
    %v90 = vadd.f32 %v86, 1e-12
    %v91 = vadd.f32 %v87, 1e-12
    %v92 = vrsqrt.pop %v90
    %v93 = vrsqrt.pop %v91
    %v94 = vmul.f32 %v88, %v92
    %v95 = vmul.f32 %v89, %v93
    %v96 = vlaneseq
    %v97 = vshrl.u32 %v96, 7
    %v98 = vsub.s32 0, %v97
    %v99 = vrot.slane %v60, %v98
    %v100 = vmul.f32 %v94, %v99
    %v101 = vmul.f32 %v95, %v99
    %v102 = vlaneseq
    %v103 = vshrl.u32 %v102, 7
    %v104 = vsub.s32 0, %v103
    %v105 = vrot.slane %v61, %v104
    %v106 = vadd.f32 %v100, %v105
    %v107 = vadd.f32 %v101, %v105
    %v108 = vld [vmem:[#allocation2] sm:$0xff]
    %v109 = vld [vmem:[#allocation2 + $0x8] sm:$0xff]
    %v110 = vld [vmem:[#allocation2 + $0x10] sm:$0xff]
    %v111 = vld [vmem:[#allocation2 + $0x18] sm:$0xff]
    %v112 = vld [vmem:[%s5 + $0x2] sm:$0x1]
    %v113 = vlaneseq
    %v114 = vshrl.u32 %v113, 7
    %v115 = vsub.s32 0, %v114
    %v116 = vrot.slane %v112, %v115
    %v118 = vsel %vm62, %v106, 0
    %v121 = vsel %vm62, %v107, 0
    %123 = vmatprep.subr.mxu0 0.0
    %124 = vmatpush1.msra.mxu0 %v108
    %125 = vmatprep.subr.mxu0 0.0
    %126 = vmatpush1.msra.mxu0 %v109
    %127 = vmatprep.subr.mxu0 0.0
    %128 = vmatpush1.msra.mxu0 %v110
    %129 = vmatprep.subr.mxu0 0.0
    %130 = vmatpush1.msra.mxu0 %v111
    %131 = vmatprep.subr.mxu0 0.0
    %132 = vmatpush1.msra.mxu0 0.0
    %133 = vmatprep.subr.mxu0 0.0
    %134 = vmatpush1.msra.mxu0 0.0
    %135 = vmatprep.subr.mxu0 0.0
    %136 = vmatpush1.msra.mxu0 0.0
    %137 = vmatprep.subr.mxu0 0.0
    %138 = vmatpush1.msra.mxu0 0.0
    %139 = vmatprep.subr.mxu0 0.0
    %140 = vmatpush1.msra.mxu0 0.0
    %141 = vmatprep.subr.mxu0 0.0
    %142 = vmatpush1.msra.mxu0 0.0
    %143 = vmatprep.subr.mxu0 0.0
    %144 = vmatpush1.msra.mxu0 0.0
    %145 = vmatprep.subr.mxu0 0.0
    %146 = vmatpush1.msra.mxu0 0.0
    %147 = vmatprep.subr.mxu0 0.0
    %148 = vmatpush1.msra.mxu0 0.0
    %149 = vmatprep.subr.mxu0 0.0
    %150 = vmatpush1.msra.mxu0 0.0
    %151 = vmatprep.subr.mxu0 0.0
    %152 = vmatpush1.msra.mxu0 0.0
    %153 = vmatprep.subr.mxu0 0.0
    %154 = vmatpush1.msra.mxu0 0.0
    %155 = vmatprep.subr.mxu0 0.0
    %156 = vmatpush1.msra.mxu0 0.0
    %157 = vmatprep.subr.mxu0 0.0
    %158 = vmatpush1.msra.mxu0 0.0
    %159 = vmatprep.subr.mxu0 0.0
    %160 = vmatpush1.msra.mxu0 0.0
    %161 = vmatprep.subr.mxu0 0.0
    %162 = vmatpush1.msra.mxu0 0.0
    %163 = vmatprep.subr.mxu0 0.0
    %164 = vmatpush1.msra.mxu0 0.0
    %165 = vmatprep.subr.mxu0 0.0
    %166 = vmatpush1.msra.mxu0 0.0
    %167 = vmatprep.subr.mxu0 0.0
    %168 = vmatpush1.msra.mxu0 0.0
    %169 = vmatprep.subr.mxu0 0.0
    %170 = vmatpush1.msra.mxu0 0.0
    %171 = vmatprep.subr.mxu0 0.0
    %172 = vmatpush1.msra.mxu0 0.0
    %173 = vmatprep.subr.mxu0 0.0
    %174 = vmatpush1.msra.mxu0 0.0
    %175 = vmatprep.subr.mxu0 0.0
    %176 = vmatpush1.msra.mxu0 0.0
    %177 = vmatprep.subr.mxu0 0.0
    %178 = vmatpush1.msra.mxu0 0.0
    %179 = vmatprep.subr.mxu0 0.0
    %180 = vmatpush1.msra.mxu0 0.0
    %181 = vmatprep.subr.mxu0 0.0
    %182 = vmatpush1.msra.mxu0 0.0
    %183 = vmatprep.subr.mxu0 0.0
    %184 = vmatpush1.msra.mxu0 0.0
    %185 = vmatprep.subr.mxu0 0.0
    %186 = vmatpush1.msra.mxu0 0.0
    %187 = vmatprep.mubr.f32.mxu0 0.0
    %188 = vmatmul.mubr.f32.gmra.mrb[0].mxu0 %v118
    %v189 = vpop.f32.mrb[0].mxu0
    %v190 = vadd.f32 %v116, %v189
    %v191 = vpop.f32.mrb[0].mxu0
    %192 = vmatprep.mubr.f32.mxu0 0.0
    %193 = vmatmul.mubr.f32.gmra.mrb[0].mxu0 %v121
    %v194 = vpop.f32.mrb[0].mxu0
    %v195 = vadd.f32 %v116, %v194
    %v196 = vpop.f32.mrb[0].mxu0
    %197 = vdwg.mxu0
    %s198 = scalar_lea.vmem [#allocation2], 32
    %v199 = vld [vmem:[%s198] sm:$0xff]
    %v200 = vld [vmem:[%s198 + $0x8] sm:$0xff]
    %v201 = vld [vmem:[%s198 + $0x10] sm:$0xff]
    %v202 = vld [vmem:[%s198 + $0x18] sm:$0xff]
    %v203 = vld [vmem:[%s5 + $0x3] sm:$0x1]
    %v204 = vlaneseq
    %v205 = vshrl.u32 %v204, 7
    %v206 = vsub.s32 0, %v205
    %v207 = vrot.slane %v203, %v206
    %208 = vmatprep.subr.mxu0 0.0
    %209 = vmatpush1.msra.mxu0 %v199
    %210 = vmatprep.subr.mxu0 0.0
    %211 = vmatpush1.msra.mxu0 %v200
    %212 = vmatprep.subr.mxu0 0.0
    %213 = vmatpush1.msra.mxu0 %v201
    %214 = vmatprep.subr.mxu0 0.0
    %215 = vmatpush1.msra.mxu0 %v202
    %216 = vmatprep.subr.mxu0 0.0
    %217 = vmatpush1.msra.mxu0 0.0
    %218 = vmatprep.subr.mxu0 0.0
    %219 = vmatpush1.msra.mxu0 0.0
    %220 = vmatprep.subr.mxu0 0.0
    %221 = vmatpush1.msra.mxu0 0.0
    %222 = vmatprep.subr.mxu0 0.0
    %223 = vmatpush1.msra.mxu0 0.0
    %224 = vmatprep.subr.mxu0 0.0
    %225 = vmatpush1.msra.mxu0 0.0
    %226 = vmatprep.subr.mxu0 0.0
    %227 = vmatpush1.msra.mxu0 0.0
    %228 = vmatprep.subr.mxu0 0.0
    %229 = vmatpush1.msra.mxu0 0.0
    %230 = vmatprep.subr.mxu0 0.0
    %231 = vmatpush1.msra.mxu0 0.0
    %232 = vmatprep.subr.mxu0 0.0
    %233 = vmatpush1.msra.mxu0 0.0
    %234 = vmatprep.subr.mxu0 0.0
    %235 = vmatpush1.msra.mxu0 0.0
    %236 = vmatprep.subr.mxu0 0.0
    %237 = vmatpush1.msra.mxu0 0.0
    %238 = vmatprep.subr.mxu0 0.0
    %239 = vmatpush1.msra.mxu0 0.0
    %240 = vmatprep.subr.mxu0 0.0
    %241 = vmatpush1.msra.mxu0 0.0
    %242 = vmatprep.subr.mxu0 0.0
    %243 = vmatpush1.msra.mxu0 0.0
    %244 = vmatprep.subr.mxu0 0.0
    %245 = vmatpush1.msra.mxu0 0.0
    %246 = vmatprep.subr.mxu0 0.0
    %247 = vmatpush1.msra.mxu0 0.0
    %248 = vmatprep.subr.mxu0 0.0
    %249 = vmatpush1.msra.mxu0 0.0
    %250 = vmatprep.subr.mxu0 0.0
    %251 = vmatpush1.msra.mxu0 0.0
    %252 = vmatprep.subr.mxu0 0.0
    %253 = vmatpush1.msra.mxu0 0.0
    %254 = vmatprep.subr.mxu0 0.0
    %255 = vmatpush1.msra.mxu0 0.0
    %256 = vmatprep.subr.mxu0 0.0
    %257 = vmatpush1.msra.mxu0 0.0
    %258 = vmatprep.subr.mxu0 0.0
    %259 = vmatpush1.msra.mxu0 0.0
    %260 = vmatprep.subr.mxu0 0.0
    %261 = vmatpush1.msra.mxu0 0.0
    %262 = vmatprep.subr.mxu0 0.0
    %263 = vmatpush1.msra.mxu0 0.0
    %264 = vmatprep.subr.mxu0 0.0
    %265 = vmatpush1.msra.mxu0 0.0
    %266 = vmatprep.subr.mxu0 0.0
    %267 = vmatpush1.msra.mxu0 0.0
    %268 = vmatprep.subr.mxu0 0.0
    %269 = vmatpush1.msra.mxu0 0.0
    %270 = vmatprep.subr.mxu0 0.0
    %271 = vmatpush1.msra.mxu0 0.0
    %272 = vmatprep.mubr.f32.mxu0 0.0
    %273 = vmatmul.mubr.f32.gmra.mrb[0].mxu0 %v118
    %v274 = vpop.f32.mrb[0].mxu0
    %v275 = vadd.f32 %v207, %v274
    %v276 = vpop.f32.mrb[0].mxu0
    %277 = vmatprep.mubr.f32.mxu0 0.0
    %278 = vmatmul.mubr.f32.gmra.mrb[0].mxu0 %v121
    %v279 = vpop.f32.mrb[0].mxu0
    %v280 = vadd.f32 %v207, %v279
    %v281 = vpop.f32.mrb[0].mxu0
    %282 = vdwg.mxu0
    %s283 = scalar_lea.vmem [#allocation2], 64
    %v284 = vld [vmem:[%s283] sm:$0xff]
    %v285 = vld [vmem:[%s283 + $0x8] sm:$0xff]
    %v286 = vld [vmem:[%s283 + $0x10] sm:$0xff]
    %v287 = vld [vmem:[%s283 + $0x18] sm:$0xff]
    %v288 = vld [vmem:[%s5 + $0x4] sm:$0x1]
    %v289 = vlaneseq
    %v290 = vshrl.u32 %v289, 7
    %v291 = vsub.s32 0, %v290
    %v292 = vrot.slane %v288, %v291
    %293 = vmatprep.subr.mxu0 0.0
    %294 = vmatpush1.msra.mxu0 %v284
    %295 = vmatprep.subr.mxu0 0.0
    %296 = vmatpush1.msra.mxu0 %v285
    %297 = vmatprep.subr.mxu0 0.0
    %298 = vmatpush1.msra.mxu0 %v286
    %299 = vmatprep.subr.mxu0 0.0
    %300 = vmatpush1.msra.mxu0 %v287
    %301 = vmatprep.subr.mxu0 0.0
    %302 = vmatpush1.msra.mxu0 0.0
    %303 = vmatprep.subr.mxu0 0.0
    %304 = vmatpush1.msra.mxu0 0.0
    %305 = vmatprep.subr.mxu0 0.0
    %306 = vmatpush1.msra.mxu0 0.0
    %307 = vmatprep.subr.mxu0 0.0
    %308 = vmatpush1.msra.mxu0 0.0
    %309 = vmatprep.subr.mxu0 0.0
    %310 = vmatpush1.msra.mxu0 0.0
    %311 = vmatprep.subr.mxu0 0.0
    %312 = vmatpush1.msra.mxu0 0.0
    %313 = vmatprep.subr.mxu0 0.0
    %314 = vmatpush1.msra.mxu0 0.0
    %315 = vmatprep.subr.mxu0 0.0
    %316 = vmatpush1.msra.mxu0 0.0
    %317 = vmatprep.subr.mxu0 0.0
    %318 = vmatpush1.msra.mxu0 0.0
    %319 = vmatprep.subr.mxu0 0.0
    %320 = vmatpush1.msra.mxu0 0.0
    %321 = vmatprep.subr.mxu0 0.0
    %322 = vmatpush1.msra.mxu0 0.0
    %323 = vmatprep.subr.mxu0 0.0
    %324 = vmatpush1.msra.mxu0 0.0
    %325 = vmatprep.subr.mxu0 0.0
    %326 = vmatpush1.msra.mxu0 0.0
    %327 = vmatprep.subr.mxu0 0.0
    %328 = vmatpush1.msra.mxu0 0.0
    %329 = vmatprep.subr.mxu0 0.0
    %330 = vmatpush1.msra.mxu0 0.0
    %331 = vmatprep.subr.mxu0 0.0
    %332 = vmatpush1.msra.mxu0 0.0
    %333 = vmatprep.subr.mxu0 0.0
    %334 = vmatpush1.msra.mxu0 0.0
    %335 = vmatprep.subr.mxu0 0.0
    %336 = vmatpush1.msra.mxu0 0.0
    %337 = vmatprep.subr.mxu0 0.0
    %338 = vmatpush1.msra.mxu0 0.0
    %339 = vmatprep.subr.mxu0 0.0
    %340 = vmatpush1.msra.mxu0 0.0
    %341 = vmatprep.subr.mxu0 0.0
    %342 = vmatpush1.msra.mxu0 0.0
    %343 = vmatprep.subr.mxu0 0.0
    %344 = vmatpush1.msra.mxu0 0.0
    %345 = vmatprep.subr.mxu0 0.0
    %346 = vmatpush1.msra.mxu0 0.0
    %347 = vmatprep.subr.mxu0 0.0
    %348 = vmatpush1.msra.mxu0 0.0
    %349 = vmatprep.subr.mxu0 0.0
    %350 = vmatpush1.msra.mxu0 0.0
    %351 = vmatprep.subr.mxu0 0.0
    %352 = vmatpush1.msra.mxu0 0.0
    %353 = vmatprep.subr.mxu0 0.0
    %354 = vmatpush1.msra.mxu0 0.0
    %355 = vmatprep.subr.mxu0 0.0
    %356 = vmatpush1.msra.mxu0 0.0
    %357 = vmatprep.mubr.f32.mxu0 0.0
    %358 = vmatmul.mubr.f32.gmra.mrb[0].mxu0 %v118
    %v359 = vpop.f32.mrb[0].mxu0
    %v360 = vadd.f32 %v292, %v359
    %v361 = vpop.f32.mrb[0].mxu0
    %362 = vmatprep.mubr.f32.mxu0 0.0
    %363 = vmatmul.mubr.f32.gmra.mrb[0].mxu0 %v121
    %v364 = vpop.f32.mrb[0].mxu0
    %v365 = vadd.f32 %v292, %v364
    %v366 = vpop.f32.mrb[0].mxu0
    %367 = vdwg.mxu0
    %v368 = vmul.f32 %v190, %v50
    %v369 = vmul.f32 %v195, %v50
    %v371 = vsel %vm62, %v368, 0
    %v374 = vsel %vm62, %v369, 0
    %v377 = vsel %vm62, %v275, 0
    %v380 = vsel %vm62, %v280, 0
    %382 = vmatprep.subr.mxu0 0.0
    %383 = vmatpush1.xpose.msra.mxu0 %v377
    %384 = vmatprep.subr.mxu0 0.0
    %385 = vmatpush1.xpose.msra.mxu0 %v380
    %386 = vmatprep.subr.mxu0 0.0
    %387 = vmatpush1.xpose.msra.mxu0 0.0
    %388 = vmatprep.subr.mxu0 0.0
    %389 = vmatpush1.xpose.msra.mxu0 0.0
    %390 = vmatprep.subr.mxu0 0.0
    %391 = vmatpush1.xpose.msra.mxu0 0.0
    %392 = vmatprep.subr.mxu0 0.0
    %393 = vmatpush1.xpose.msra.mxu0 0.0
    %394 = vmatprep.subr.mxu0 0.0
    %395 = vmatpush1.xpose.msra.mxu0 0.0
    %396 = vmatprep.subr.mxu0 0.0
    %397 = vmatpush1.xpose.msra.mxu0 0.0
    %398 = vmatprep.subr.mxu0 0.0
    %399 = vmatpush1.xpose.msra.mxu0 0.0
    %400 = vmatprep.subr.mxu0 0.0
    %401 = vmatpush1.xpose.msra.mxu0 0.0
    %402 = vmatprep.subr.mxu0 0.0
    %403 = vmatpush1.xpose.msra.mxu0 0.0
    %404 = vmatprep.subr.mxu0 0.0
    %405 = vmatpush1.xpose.msra.mxu0 0.0
    %406 = vmatprep.subr.mxu0 0.0
    %407 = vmatpush1.xpose.msra.mxu0 0.0
    %408 = vmatprep.subr.mxu0 0.0
    %409 = vmatpush1.xpose.msra.mxu0 0.0
    %410 = vmatprep.subr.mxu0 0.0
    %411 = vmatpush1.xpose.msra.mxu0 0.0
    %412 = vmatprep.subr.mxu0 0.0
    %413 = vmatpush1.xpose.msra.mxu0 0.0
    %414 = vmatprep.subr.mxu0 0.0
    %415 = vmatpush1.xpose.msra.mxu0 0.0
    %416 = vmatprep.subr.mxu0 0.0
    %417 = vmatpush1.xpose.msra.mxu0 0.0
    %418 = vmatprep.subr.mxu0 0.0
    %419 = vmatpush1.xpose.msra.mxu0 0.0
    %420 = vmatprep.subr.mxu0 0.0
    %421 = vmatpush1.xpose.msra.mxu0 0.0
    %422 = vmatprep.subr.mxu0 0.0
    %423 = vmatpush1.xpose.msra.mxu0 0.0
    %424 = vmatprep.subr.mxu0 0.0
    %425 = vmatpush1.xpose.msra.mxu0 0.0
    %426 = vmatprep.subr.mxu0 0.0
    %427 = vmatpush1.xpose.msra.mxu0 0.0
    %428 = vmatprep.subr.mxu0 0.0
    %429 = vmatpush1.xpose.msra.mxu0 0.0
    %430 = vmatprep.subr.mxu0 0.0
    %431 = vmatpush1.xpose.msra.mxu0 0.0
    %432 = vmatprep.subr.mxu0 0.0
    %433 = vmatpush1.xpose.msra.mxu0 0.0
    %434 = vmatprep.subr.mxu0 0.0
    %435 = vmatpush1.xpose.msra.mxu0 0.0
    %436 = vmatprep.subr.mxu0 0.0
    %437 = vmatpush1.xpose.msra.mxu0 0.0
    %438 = vmatprep.subr.mxu0 0.0
    %439 = vmatpush1.xpose.msra.mxu0 0.0
    %440 = vmatprep.subr.mxu0 0.0
    %441 = vmatpush1.xpose.msra.mxu0 0.0
    %442 = vmatprep.subr.mxu0 0.0
    %443 = vmatpush1.xpose.msra.mxu0 0.0
    %444 = vmatprep.subr.mxu0 0.0
    %445 = vmatpush1.xpose.msra.mxu0 0.0
    %446 = vmatprep.mubr.f32.mxu0 0.0
    %447 = vmatmul.mubr.f32.gmra.mrb[0].mxu0 %v371
    %v448 = vpop.f32.mrb[0].mxu0
    %v449 = vadd.f32 0.0, %v448
    %v450 = vpop.f32.mrb[0].mxu0
    %451 = vmatprep.mubr.f32.mxu0 0.0
    %452 = vmatmul.mubr.f32.gmra.mrb[0].mxu0 %v374
    %v453 = vpop.f32.mrb[0].mxu0
    %v454 = vadd.f32 0.0, %v453
    %v455 = vpop.f32.mrb[0].mxu0
    %456 = vdwg.mxu0
    %v457 = vmul.f32 %v449, 0.25
    %v458 = vmul.f32 %v454, 0.25
    %v459 = vadd.f32 %v457, %v56
    %v460 = vadd.f32 %v458, %v57
    %vm461 = vcmask 130048
    %v462 = vsel %vm461, %v459, -inf
    %463 = vmax.xlane.f32.xlu0 %v462
    %v464 = vpop.xlane.xlu0 %463
    %v465 = vsel %vm461, %v460, -inf
    %466 = vmax.xlane.f32.xlu0 %v465
    %v467 = vpop.xlane.xlu0 %466
    %v468 = vsub.f32 %v459, %v464
    %v469 = vsub.f32 %v460, %v467
    %v470 = vmul.f32 %v468, 1.442695
    %v471 = vpow.pop %v470
    %v472 = vmul.f32 %v469, 1.442695
    %v473 = vpow.pop %v472
    %v474 = vsel %vm461, %v471, 0.0
    %475 = vadd.xlane.f32.xlu0 %v474
    %v476 = vpop.xlane.xlu0 %475
    %v477 = vsel %vm461, %v473, 0.0
    %478 = vadd.xlane.f32.xlu0 %v477
    %v479 = vpop.xlane.xlu0 %478
    %v480 = vrcp.pop %v476
    %v481 = vrcp.pop %v479
    %v482 = vmul.f32 %v471, %v480
    %v483 = vmul.f32 %v473, %v481
    %v484 = vmul.f32 %v360, %v50
    %v485 = vmul.f32 %v365, %v50
    %v486 = vmul.f32 %v190, %v55
    %v487 = vmul.f32 %v195, %v55
    %v489 = vsel %vm62, %v486, 0
    %v492 = vsel %vm62, %v487, 0
    %494 = vmatprep.subr.mxu0 0.0
    %495 = vmatpush1.xpose.msra.mxu0 %v377
    %496 = vmatprep.subr.mxu0 0.0
    %497 = vmatpush1.xpose.msra.mxu0 %v380
    %498 = vmatprep.subr.mxu0 0.0
    %499 = vmatpush1.xpose.msra.mxu0 0.0
    %500 = vmatprep.subr.mxu0 0.0
    %501 = vmatpush1.xpose.msra.mxu0 0.0
    %502 = vmatprep.subr.mxu0 0.0
    %503 = vmatpush1.xpose.msra.mxu0 0.0
    %504 = vmatprep.subr.mxu0 0.0
    %505 = vmatpush1.xpose.msra.mxu0 0.0
    %506 = vmatprep.subr.mxu0 0.0
    %507 = vmatpush1.xpose.msra.mxu0 0.0
    %508 = vmatprep.subr.mxu0 0.0
    %509 = vmatpush1.xpose.msra.mxu0 0.0
    %510 = vmatprep.subr.mxu0 0.0
    %511 = vmatpush1.xpose.msra.mxu0 0.0
    %512 = vmatprep.subr.mxu0 0.0
    %513 = vmatpush1.xpose.msra.mxu0 0.0
    %514 = vmatprep.subr.mxu0 0.0
    %515 = vmatpush1.xpose.msra.mxu0 0.0
    %516 = vmatprep.subr.mxu0 0.0
    %517 = vmatpush1.xpose.msra.mxu0 0.0
    %518 = vmatprep.subr.mxu0 0.0
    %519 = vmatpush1.xpose.msra.mxu0 0.0
    %520 = vmatprep.subr.mxu0 0.0
    %521 = vmatpush1.xpose.msra.mxu0 0.0
    %522 = vmatprep.subr.mxu0 0.0
    %523 = vmatpush1.xpose.msra.mxu0 0.0
    %524 = vmatprep.subr.mxu0 0.0
    %525 = vmatpush1.xpose.msra.mxu0 0.0
    %526 = vmatprep.subr.mxu0 0.0
    %527 = vmatpush1.xpose.msra.mxu0 0.0
    %528 = vmatprep.subr.mxu0 0.0
    %529 = vmatpush1.xpose.msra.mxu0 0.0
    %530 = vmatprep.subr.mxu0 0.0
    %531 = vmatpush1.xpose.msra.mxu0 0.0
    %532 = vmatprep.subr.mxu0 0.0
    %533 = vmatpush1.xpose.msra.mxu0 0.0
    %534 = vmatprep.subr.mxu0 0.0
    %535 = vmatpush1.xpose.msra.mxu0 0.0
    %536 = vmatprep.subr.mxu0 0.0
    %537 = vmatpush1.xpose.msra.mxu0 0.0
    %538 = vmatprep.subr.mxu0 0.0
    %539 = vmatpush1.xpose.msra.mxu0 0.0
    %540 = vmatprep.subr.mxu0 0.0
    %541 = vmatpush1.xpose.msra.mxu0 0.0
    %542 = vmatprep.subr.mxu0 0.0
    %543 = vmatpush1.xpose.msra.mxu0 0.0
    %544 = vmatprep.subr.mxu0 0.0
    %545 = vmatpush1.xpose.msra.mxu0 0.0
    %546 = vmatprep.subr.mxu0 0.0
    %547 = vmatpush1.xpose.msra.mxu0 0.0
    %548 = vmatprep.subr.mxu0 0.0
    %549 = vmatpush1.xpose.msra.mxu0 0.0
    %550 = vmatprep.subr.mxu0 0.0
    %551 = vmatpush1.xpose.msra.mxu0 0.0
    %552 = vmatprep.subr.mxu0 0.0
    %553 = vmatpush1.xpose.msra.mxu0 0.0
    %554 = vmatprep.subr.mxu0 0.0
    %555 = vmatpush1.xpose.msra.mxu0 0.0
    %556 = vmatprep.subr.mxu0 0.0
    %557 = vmatpush1.xpose.msra.mxu0 0.0
    %558 = vmatprep.mubr.f32.mxu0 0.0
    %559 = vmatmul.mubr.f32.gmra.mrb[0].mxu0 %v489
    %v560 = vpop.f32.mrb[0].mxu0
    %v561 = vadd.f32 0.0, %v560
    %v562 = vpop.f32.mrb[0].mxu0
    %563 = vmatprep.mubr.f32.mxu0 0.0
    %564 = vmatmul.mubr.f32.gmra.mrb[0].mxu0 %v492
    %v565 = vpop.f32.mrb[0].mxu0
    %v566 = vadd.f32 0.0, %v565
    %v567 = vpop.f32.mrb[0].mxu0
    %568 = vdwg.mxu0
    %v569 = vmul.f32 %v561, 0.25
    %v570 = vmul.f32 %v566, 0.25
    %v571 = vadd.f32 %v569, %v56
    %v572 = vadd.f32 %v570, %v57
    %v573 = vsel %vm461, %v571, -inf
    %574 = vmax.xlane.f32.xlu0 %v573
    %v575 = vpop.xlane.xlu0 %574
    %v576 = vsel %vm461, %v572, -inf
    %577 = vmax.xlane.f32.xlu0 %v576
    %v578 = vpop.xlane.xlu0 %577
    %v579 = vsub.f32 %v571, %v575
    %v580 = vsub.f32 %v572, %v578
    %v581 = vmul.f32 %v579, 1.442695
    %v582 = vpow.pop %v581
    %v583 = vmul.f32 %v580, 1.442695
    %v584 = vpow.pop %v583
    %v585 = vsel %vm461, %v582, 0.0
    %586 = vadd.xlane.f32.xlu0 %v585
    %v587 = vpop.xlane.xlu0 %586
    %v588 = vsel %vm461, %v584, 0.0
    %589 = vadd.xlane.f32.xlu0 %v588
    %v590 = vpop.xlane.xlu0 %589
    %v591 = vrcp.pop %v587
    %v592 = vrcp.pop %v590
    %v593 = vmul.f32 %v582, %v591
    %v594 = vmul.f32 %v584, %v592
    %v595 = vmul.f32 %v360, %v55
    %v596 = vmul.f32 %v365, %v55
    %v598 = vsel %vm461, %v593, 0
    %v601 = vsel %vm461, %v594, 0
    %603 = vmatprep.subr.mxu0 0.0
    %604 = vmatpush1.msra.mxu0 %v595
    %605 = vmatprep.subr.mxu0 0.0
    %606 = vmatpush1.msra.mxu0 %v596
    %607 = vmatprep.subr.mxu0 0.0
    %608 = vmatpush1.msra.mxu0 0.0
    %609 = vmatprep.subr.mxu0 0.0
    %610 = vmatpush1.msra.mxu0 0.0
    %611 = vmatprep.subr.mxu0 0.0
    %612 = vmatpush1.msra.mxu0 0.0
    %613 = vmatprep.subr.mxu0 0.0
    %614 = vmatpush1.msra.mxu0 0.0
    %615 = vmatprep.subr.mxu0 0.0
    %616 = vmatpush1.msra.mxu0 0.0
    %617 = vmatprep.subr.mxu0 0.0
    %618 = vmatpush1.msra.mxu0 0.0
    %619 = vmatprep.subr.mxu0 0.0
    %620 = vmatpush1.msra.mxu0 0.0
    %621 = vmatprep.subr.mxu0 0.0
    %622 = vmatpush1.msra.mxu0 0.0
    %623 = vmatprep.subr.mxu0 0.0
    %624 = vmatpush1.msra.mxu0 0.0
    %625 = vmatprep.subr.mxu0 0.0
    %626 = vmatpush1.msra.mxu0 0.0
    %627 = vmatprep.subr.mxu0 0.0
    %628 = vmatpush1.msra.mxu0 0.0
    %629 = vmatprep.subr.mxu0 0.0
    %630 = vmatpush1.msra.mxu0 0.0
    %631 = vmatprep.subr.mxu0 0.0
    %632 = vmatpush1.msra.mxu0 0.0
    %633 = vmatprep.subr.mxu0 0.0
    %634 = vmatpush1.msra.mxu0 0.0
    %635 = vmatprep.subr.mxu0 0.0
    %636 = vmatpush1.msra.mxu0 0.0
    %637 = vmatprep.subr.mxu0 0.0
    %638 = vmatpush1.msra.mxu0 0.0
    %639 = vmatprep.subr.mxu0 0.0
    %640 = vmatpush1.msra.mxu0 0.0
    %641 = vmatprep.subr.mxu0 0.0
    %642 = vmatpush1.msra.mxu0 0.0
    %643 = vmatprep.subr.mxu0 0.0
    %644 = vmatpush1.msra.mxu0 0.0
    %645 = vmatprep.subr.mxu0 0.0
    %646 = vmatpush1.msra.mxu0 0.0
    %647 = vmatprep.subr.mxu0 0.0
    %648 = vmatpush1.msra.mxu0 0.0
    %649 = vmatprep.subr.mxu0 0.0
    %650 = vmatpush1.msra.mxu0 0.0
    %651 = vmatprep.subr.mxu0 0.0
    %652 = vmatpush1.msra.mxu0 0.0
    %653 = vmatprep.subr.mxu0 0.0
    %654 = vmatpush1.msra.mxu0 0.0
    %655 = vmatprep.subr.mxu0 0.0
    %656 = vmatpush1.msra.mxu0 0.0
    %657 = vmatprep.subr.mxu0 0.0
    %658 = vmatpush1.msra.mxu0 0.0
    %659 = vmatprep.subr.mxu0 0.0
    %660 = vmatpush1.msra.mxu0 0.0
    %661 = vmatprep.subr.mxu0 0.0
    %662 = vmatpush1.msra.mxu0 0.0
    %663 = vmatprep.subr.mxu0 0.0
    %664 = vmatpush1.msra.mxu0 0.0
    %665 = vmatprep.subr.mxu0 0.0
    %666 = vmatpush1.msra.mxu0 0.0
    %667 = vmatprep.mubr.f32.mxu0 0.0
    %668 = vmatmul.mubr.f32.gmra.mrb[0].mxu0 %v598
    %v669 = vpop.f32.mrb[0].mxu0
    %v670 = vadd.f32 0.0, %v669
    %v671 = vpop.f32.mrb[0].mxu0
    %672 = vmatprep.mubr.f32.mxu0 0.0
    %673 = vmatmul.mubr.f32.gmra.mrb[0].mxu0 %v601
    %v674 = vpop.f32.mrb[0].mxu0
    %v675 = vadd.f32 0.0, %v674
    %v676 = vpop.f32.mrb[0].mxu0
    %677 = vdwg.mxu0
    %v679 = vsel %vm461, %v482, 0
    %v682 = vsel %vm461, %v483, 0
    %684 = vmatprep.subr.mxu0 0.0
    %685 = vmatpush1.msra.mxu0 %v484
    %686 = vmatprep.subr.mxu0 0.0
    %687 = vmatpush1.msra.mxu0 %v485
    %688 = vmatprep.subr.mxu0 0.0
    %689 = vmatpush1.msra.mxu0 0.0
    %690 = vmatprep.subr.mxu0 0.0
    %691 = vmatpush1.msra.mxu0 0.0
    %692 = vmatprep.subr.mxu0 0.0
    %693 = vmatpush1.msra.mxu0 0.0
    %694 = vmatprep.subr.mxu0 0.0
    %695 = vmatpush1.msra.mxu0 0.0
    %696 = vmatprep.subr.mxu0 0.0
    %697 = vmatpush1.msra.mxu0 0.0
    %698 = vmatprep.subr.mxu0 0.0
    %699 = vmatpush1.msra.mxu0 0.0
    %700 = vmatprep.subr.mxu0 0.0
    %701 = vmatpush1.msra.mxu0 0.0
    %702 = vmatprep.subr.mxu0 0.0
    %703 = vmatpush1.msra.mxu0 0.0
    %704 = vmatprep.subr.mxu0 0.0
    %705 = vmatpush1.msra.mxu0 0.0
    %706 = vmatprep.subr.mxu0 0.0
    %707 = vmatpush1.msra.mxu0 0.0
    %708 = vmatprep.subr.mxu0 0.0
    %709 = vmatpush1.msra.mxu0 0.0
    %710 = vmatprep.subr.mxu0 0.0
    %711 = vmatpush1.msra.mxu0 0.0
    %712 = vmatprep.subr.mxu0 0.0
    %713 = vmatpush1.msra.mxu0 0.0
    %714 = vmatprep.subr.mxu0 0.0
    %715 = vmatpush1.msra.mxu0 0.0
    %716 = vmatprep.subr.mxu0 0.0
    %717 = vmatpush1.msra.mxu0 0.0
    %718 = vmatprep.subr.mxu0 0.0
    %719 = vmatpush1.msra.mxu0 0.0
    %720 = vmatprep.subr.mxu0 0.0
    %721 = vmatpush1.msra.mxu0 0.0
    %722 = vmatprep.subr.mxu0 0.0
    %723 = vmatpush1.msra.mxu0 0.0
    %724 = vmatprep.subr.mxu0 0.0
    %725 = vmatpush1.msra.mxu0 0.0
    %726 = vmatprep.subr.mxu0 0.0
    %727 = vmatpush1.msra.mxu0 0.0
    %728 = vmatprep.subr.mxu0 0.0
    %729 = vmatpush1.msra.mxu0 0.0
    %730 = vmatprep.subr.mxu0 0.0
    %731 = vmatpush1.msra.mxu0 0.0
    %732 = vmatprep.subr.mxu0 0.0
    %733 = vmatpush1.msra.mxu0 0.0
    %734 = vmatprep.subr.mxu0 0.0
    %735 = vmatpush1.msra.mxu0 0.0
    %736 = vmatprep.subr.mxu0 0.0
    %737 = vmatpush1.msra.mxu0 0.0
    %738 = vmatprep.subr.mxu0 0.0
    %739 = vmatpush1.msra.mxu0 0.0
    %740 = vmatprep.subr.mxu0 0.0
    %741 = vmatpush1.msra.mxu0 0.0
    %742 = vmatprep.subr.mxu0 0.0
    %743 = vmatpush1.msra.mxu0 0.0
    %744 = vmatprep.subr.mxu0 0.0
    %745 = vmatpush1.msra.mxu0 0.0
    %746 = vmatprep.subr.mxu0 0.0
    %747 = vmatpush1.msra.mxu0 0.0
    %748 = vmatprep.mubr.f32.mxu0 0.0
    %749 = vmatmul.mubr.f32.gmra.mrb[0].mxu0 %v679
    %v750 = vpop.f32.mrb[0].mxu0
    %v751 = vadd.f32 %v670, %v750
    %v752 = vpop.f32.mrb[0].mxu0
    %753 = vmatprep.mubr.f32.mxu0 0.0
    %754 = vmatmul.mubr.f32.gmra.mrb[0].mxu0 %v682
    %v755 = vpop.f32.mrb[0].mxu0
    %v756 = vadd.f32 %v675, %v755
    %v757 = vpop.f32.mrb[0].mxu0
    %758 = vdwg.mxu0
    %s759 = scalar_lea.vmem [#allocation2], 96
    %v760 = vld [vmem:[%s759] sm:$0xff]
    %v761 = vld [vmem:[%s759 + $0x8] sm:$0xff]
    %v762 = vld [vmem:[%s759 + $0x10] sm:$0xff]
    %v763 = vld [vmem:[%s759 + $0x18] sm:$0xff]
    %v764 = vld [vmem:[%s5 + $0x5] sm:$0x1]
    %v765 = vlaneseq
    %v766 = vshrl.u32 %v765, 7
    %v767 = vsub.s32 0, %v766
    %v768 = vrot.slane %v764, %v767
    %v770 = vsel %vm62, %v751, 0
    %v773 = vsel %vm62, %v756, 0
    %775 = vmatprep.subr.mxu0 0.0
    %776 = vmatpush1.msra.mxu0 %v760
    %777 = vmatprep.subr.mxu0 0.0
    %778 = vmatpush1.msra.mxu0 %v761
    %779 = vmatprep.subr.mxu0 0.0
    %780 = vmatpush1.msra.mxu0 %v762
    %781 = vmatprep.subr.mxu0 0.0
    %782 = vmatpush1.msra.mxu0 %v763
    %783 = vmatprep.subr.mxu0 0.0
    %784 = vmatpush1.msra.mxu0 0.0
    %785 = vmatprep.subr.mxu0 0.0
    %786 = vmatpush1.msra.mxu0 0.0
    %787 = vmatprep.subr.mxu0 0.0
    %788 = vmatpush1.msra.mxu0 0.0
    %789 = vmatprep.subr.mxu0 0.0
    %790 = vmatpush1.msra.mxu0 0.0
    %791 = vmatprep.subr.mxu0 0.0
    %792 = vmatpush1.msra.mxu0 0.0
    %793 = vmatprep.subr.mxu0 0.0
    %794 = vmatpush1.msra.mxu0 0.0
    %795 = vmatprep.subr.mxu0 0.0
    %796 = vmatpush1.msra.mxu0 0.0
    %797 = vmatprep.subr.mxu0 0.0
    %798 = vmatpush1.msra.mxu0 0.0
    %799 = vmatprep.subr.mxu0 0.0
    %800 = vmatpush1.msra.mxu0 0.0
    %801 = vmatprep.subr.mxu0 0.0
    %802 = vmatpush1.msra.mxu0 0.0
    %803 = vmatprep.subr.mxu0 0.0
    %804 = vmatpush1.msra.mxu0 0.0
    %805 = vmatprep.subr.mxu0 0.0
    %806 = vmatpush1.msra.mxu0 0.0
    %807 = vmatprep.subr.mxu0 0.0
    %808 = vmatpush1.msra.mxu0 0.0
    %809 = vmatprep.subr.mxu0 0.0
    %810 = vmatpush1.msra.mxu0 0.0
    %811 = vmatprep.subr.mxu0 0.0
    %812 = vmatpush1.msra.mxu0 0.0
    %813 = vmatprep.subr.mxu0 0.0
    %814 = vmatpush1.msra.mxu0 0.0
    %815 = vmatprep.subr.mxu0 0.0
    %816 = vmatpush1.msra.mxu0 0.0
    %817 = vmatprep.subr.mxu0 0.0
    %818 = vmatpush1.msra.mxu0 0.0
    %819 = vmatprep.subr.mxu0 0.0
    %820 = vmatpush1.msra.mxu0 0.0
    %821 = vmatprep.subr.mxu0 0.0
    %822 = vmatpush1.msra.mxu0 0.0
    %823 = vmatprep.subr.mxu0 0.0
    %824 = vmatpush1.msra.mxu0 0.0
    %825 = vmatprep.subr.mxu0 0.0
    %826 = vmatpush1.msra.mxu0 0.0
    %827 = vmatprep.subr.mxu0 0.0
    %828 = vmatpush1.msra.mxu0 0.0
    %829 = vmatprep.subr.mxu0 0.0
    %830 = vmatpush1.msra.mxu0 0.0
    %831 = vmatprep.subr.mxu0 0.0
    %832 = vmatpush1.msra.mxu0 0.0
    %833 = vmatprep.subr.mxu0 0.0
    %834 = vmatpush1.msra.mxu0 0.0
    %835 = vmatprep.subr.mxu0 0.0
    %836 = vmatpush1.msra.mxu0 0.0
    %837 = vmatprep.subr.mxu0 0.0
    %838 = vmatpush1.msra.mxu0 0.0
    %839 = vmatprep.mubr.f32.mxu0 0.0
    %840 = vmatmul.mubr.f32.gmra.mrb[0].mxu0 %v770
    %v841 = vpop.f32.mrb[0].mxu0
    %v842 = vadd.f32 %v768, %v841
    %v843 = vpop.f32.mrb[0].mxu0
    %844 = vmatprep.mubr.f32.mxu0 0.0
    %845 = vmatmul.mubr.f32.gmra.mrb[0].mxu0 %v773
    %v846 = vpop.f32.mrb[0].mxu0
    %v847 = vadd.f32 %v768, %v846
    %v848 = vpop.f32.mrb[0].mxu0
    %849 = vdwg.mxu0
    %v850 = vadd.f32 %v106, %v842
    %v851 = vadd.f32 %v107, %v847
    %v852 = vld [vmem:[%s5 + $0x6] sm:$0x1]
    %v853 = vld [vmem:[%s5 + $0x7] sm:$0x1]
    %v854 = vsel %vm62, %v850, 0.0
    %855 = vadd.xlane.f32.xlu0 %v854
    %v856 = vpop.xlane.xlu0 %855
    %v857 = vsel %vm62, %v851, 0.0
    %858 = vadd.xlane.f32.xlu0 %v857
    %v859 = vpop.xlane.xlu0 %858
    %v860 = vmul.f32 %v856, %v69
    %v861 = vmul.f32 %v859, %v69
    %v862 = vmul.f32 %v850, %v850
    %v863 = vmul.f32 %v851, %v851
    %v864 = vsel %vm62, %v862, 0.0
    %865 = vadd.xlane.f32.xlu0 %v864
    %v866 = vpop.xlane.xlu0 %865
    %v867 = vsel %vm62, %v863, 0.0
    %868 = vadd.xlane.f32.xlu0 %v867
    %v869 = vpop.xlane.xlu0 %868
    %v870 = vmul.f32 %v866, %v69
    %v871 = vmul.f32 %v869, %v69
    %v872 = vmul.f32 %v860, %v860
    %v873 = vmul.f32 %v861, %v861
    %v874 = vsub.f32 %v870, %v872
    %v875 = vsub.f32 %v871, %v873
    %v876 = vmax.f32 %v874, 0.0
    %v877 = vmax.f32 %v875, 0.0
    %v878 = vsub.f32 %v850, %v860
    %v879 = vsub.f32 %v851, %v861
    %v880 = vadd.f32 %v876, 1e-12
    %v881 = vadd.f32 %v877, 1e-12
    %v882 = vrsqrt.pop %v880
    %v883 = vrsqrt.pop %v881
    %v884 = vmul.f32 %v878, %v882
    %v885 = vmul.f32 %v879, %v883
    %v886 = vlaneseq
    %v887 = vshrl.u32 %v886, 7
    %v888 = vsub.s32 0, %v887
    %v889 = vrot.slane %v852, %v888
    %v890 = vmul.f32 %v884, %v889
    %v891 = vmul.f32 %v885, %v889
    %v892 = vlaneseq
    %v893 = vshrl.u32 %v892, 7
    %v894 = vsub.s32 0, %v893
    %v895 = vrot.slane %v853, %v894
    %v896 = vadd.f32 %v890, %v895
    %v897 = vadd.f32 %v891, %v895
    %v898 = vld [vmem:[%s3] sm:$0xff]
    %v899 = vld [vmem:[%s3 + $0x8] sm:$0xff]
    %v900 = vld [vmem:[%s3 + $0x10] sm:$0xff]
    %v901 = vld [vmem:[%s3 + $0x18] sm:$0xff]
    %v902 = vld [vmem:[%s5 + $0x8] sm:$0x1]
    %v903 = vlaneseq
    %v904 = vshrl.u32 %v903, 7
    %v905 = vsub.s32 0, %v904
    %v906 = vrot.slane %v902, %v905
    %v908 = vsel %vm62, %v896, 0
    %v911 = vsel %vm62, %v897, 0
    %913 = vmatprep.subr.mxu0 0.0
    %914 = vmatpush1.msra.mxu0 %v898
    %915 = vmatprep.subr.mxu0 0.0
    %916 = vmatpush1.msra.mxu0 %v899
    %917 = vmatprep.subr.mxu0 0.0
    %918 = vmatpush1.msra.mxu0 %v900
    %919 = vmatprep.subr.mxu0 0.0
    %920 = vmatpush1.msra.mxu0 %v901
    %921 = vmatprep.subr.mxu0 0.0
    %922 = vmatpush1.msra.mxu0 0.0
    %923 = vmatprep.subr.mxu0 0.0
    %924 = vmatpush1.msra.mxu0 0.0
    %925 = vmatprep.subr.mxu0 0.0
    %926 = vmatpush1.msra.mxu0 0.0
    %927 = vmatprep.subr.mxu0 0.0
    %928 = vmatpush1.msra.mxu0 0.0
    %929 = vmatprep.subr.mxu0 0.0
    %930 = vmatpush1.msra.mxu0 0.0
    %931 = vmatprep.subr.mxu0 0.0
    %932 = vmatpush1.msra.mxu0 0.0
    %933 = vmatprep.subr.mxu0 0.0
    %934 = vmatpush1.msra.mxu0 0.0
    %935 = vmatprep.subr.mxu0 0.0
    %936 = vmatpush1.msra.mxu0 0.0
    %937 = vmatprep.subr.mxu0 0.0
    %938 = vmatpush1.msra.mxu0 0.0
    %939 = vmatprep.subr.mxu0 0.0
    %940 = vmatpush1.msra.mxu0 0.0
    %941 = vmatprep.subr.mxu0 0.0
    %942 = vmatpush1.msra.mxu0 0.0
    %943 = vmatprep.subr.mxu0 0.0
    %944 = vmatpush1.msra.mxu0 0.0
    %945 = vmatprep.subr.mxu0 0.0
    %946 = vmatpush1.msra.mxu0 0.0
    %947 = vmatprep.subr.mxu0 0.0
    %948 = vmatpush1.msra.mxu0 0.0
    %949 = vmatprep.subr.mxu0 0.0
    %950 = vmatpush1.msra.mxu0 0.0
    %951 = vmatprep.subr.mxu0 0.0
    %952 = vmatpush1.msra.mxu0 0.0
    %953 = vmatprep.subr.mxu0 0.0
    %954 = vmatpush1.msra.mxu0 0.0
    %955 = vmatprep.subr.mxu0 0.0
    %956 = vmatpush1.msra.mxu0 0.0
    %957 = vmatprep.subr.mxu0 0.0
    %958 = vmatpush1.msra.mxu0 0.0
    %959 = vmatprep.subr.mxu0 0.0
    %960 = vmatpush1.msra.mxu0 0.0
    %961 = vmatprep.subr.mxu0 0.0
    %962 = vmatpush1.msra.mxu0 0.0
    %963 = vmatprep.subr.mxu0 0.0
    %964 = vmatpush1.msra.mxu0 0.0
    %965 = vmatprep.subr.mxu0 0.0
    %966 = vmatpush1.msra.mxu0 0.0
    %967 = vmatprep.subr.mxu0 0.0
    %968 = vmatpush1.msra.mxu0 0.0
    %969 = vmatprep.subr.mxu0 0.0
    %970 = vmatpush1.msra.mxu0 0.0
    %971 = vmatprep.subr.mxu0 0.0
    %972 = vmatpush1.msra.mxu0 0.0
    %973 = vmatprep.subr.mxu0 0.0
    %974 = vmatpush1.msra.mxu0 0.0
    %975 = vmatprep.subr.mxu0 0.0
    %976 = vmatpush1.msra.mxu0 0.0
    %977 = vmatprep.mubr.f32.mxu0 0.0
    %978 = vmatmul.mubr.f32.gmra.mrb[0].mxu0 %v908
    %v979 = vpop.f32.mrb[0].mxu0
    %v980 = vadd.f32 %v906, %v979
    %v981 = vpop.f32.mrb[0].mxu0
    %982 = vmatprep.mubr.f32.mxu0 0.0
    %983 = vmatmul.mubr.f32.gmra.mrb[0].mxu0 %v911
    %v984 = vpop.f32.mrb[0].mxu0
    %v985 = vadd.f32 %v906, %v984
    %v986 = vpop.f32.mrb[0].mxu0
    %987 = vdwg.mxu0
    %v988 = vmul.f32 %v980, 0.5
    %v989 = vmul.f32 %v985, 0.5
    %v990 = vmul.f32 %v980, 0.044715
    %v991 = vmul.f32 %v985, 0.044715
    %v992 = vmul.f32 %v990, %v980
    %v993 = vmul.f32 %v991, %v985
    %v994 = vmul.f32 %v992, %v980
    %v995 = vmul.f32 %v993, %v985
    %v996 = vadd.f32 %v980, %v994
    %v997 = vadd.f32 %v985, %v995
    %v998 = vmul.f32 %v996, 0.7978846
    %v999 = vmul.f32 %v997, 0.7978846
    %v1000 = vtanh.pop %v998
    %v1001 = vtanh.pop %v999
    %v1002 = vadd.f32 %v1000, 1.0
    %v1003 = vadd.f32 %v1001, 1.0
    %v1004 = vmul.f32 %v988, %v1002
    %v1005 = vmul.f32 %v989, %v1003
    %v1006 = vld [vmem:[%s4] sm:$0xff]
    %v1007 = vld [vmem:[%s4 + $0x8] sm:$0xff]
    %v1008 = vld [vmem:[%s4 + $0x10] sm:$0xff]
    %v1009 = vld [vmem:[%s4 + $0x18] sm:$0xff]
    %v1010 = vld [vmem:[%s4 + $0x20] sm:$0xff]
    %v1011 = vld [vmem:[%s4 + $0x28] sm:$0xff]
    %v1012 = vld [vmem:[%s4 + $0x30] sm:$0xff]
    %v1013 = vld [vmem:[%s4 + $0x38] sm:$0xff]
    %v1014 = vld [vmem:[%s5 + $0x9] sm:$0x1]
    %v1015 = vlaneseq
    %v1016 = vshrl.u32 %v1015, 7
    %v1017 = vsub.s32 0, %v1016
    %v1018 = vrot.slane %v1014, %v1017
    %vm1019 = vcmask 523264
    %v1021 = vsel %vm1019, %v1004, 0
    %v1024 = vsel %vm1019, %v1005, 0
    %1026 = vmatprep.subr.mxu0 0.0
    %1027 = vmatpush1.msra.mxu0 %v1006
    %1028 = vmatprep.subr.mxu0 0.0
    %1029 = vmatpush1.msra.mxu0 %v1007
    %1030 = vmatprep.subr.mxu0 0.0
    %1031 = vmatpush1.msra.mxu0 %v1008
    %1032 = vmatprep.subr.mxu0 0.0
    %1033 = vmatpush1.msra.mxu0 %v1009
    %1034 = vmatprep.subr.mxu0 0.0
    %1035 = vmatpush1.msra.mxu0 %v1010
    %1036 = vmatprep.subr.mxu0 0.0
    %1037 = vmatpush1.msra.mxu0 %v1011
    %1038 = vmatprep.subr.mxu0 0.0
    %1039 = vmatpush1.msra.mxu0 %v1012
    %1040 = vmatprep.subr.mxu0 0.0
    %1041 = vmatpush1.msra.mxu0 %v1013
    %1042 = vmatprep.subr.mxu0 0.0
    %1043 = vmatpush1.msra.mxu0 0.0
    %1044 = vmatprep.subr.mxu0 0.0
    %1045 = vmatpush1.msra.mxu0 0.0
    %1046 = vmatprep.subr.mxu0 0.0
    %1047 = vmatpush1.msra.mxu0 0.0
    %1048 = vmatprep.subr.mxu0 0.0
    %1049 = vmatpush1.msra.mxu0 0.0
    %1050 = vmatprep.subr.mxu0 0.0
    %1051 = vmatpush1.msra.mxu0 0.0
    %1052 = vmatprep.subr.mxu0 0.0
    %1053 = vmatpush1.msra.mxu0 0.0
    %1054 = vmatprep.subr.mxu0 0.0
    %1055 = vmatpush1.msra.mxu0 0.0
    %1056 = vmatprep.subr.mxu0 0.0
    %1057 = vmatpush1.msra.mxu0 0.0
    %1058 = vmatprep.subr.mxu0 0.0
    %1059 = vmatpush1.msra.mxu0 0.0
    %1060 = vmatprep.subr.mxu0 0.0
    %1061 = vmatpush1.msra.mxu0 0.0
    %1062 = vmatprep.subr.mxu0 0.0
    %1063 = vmatpush1.msra.mxu0 0.0
    %1064 = vmatprep.subr.mxu0 0.0
    %1065 = vmatpush1.msra.mxu0 0.0
    %1066 = vmatprep.subr.mxu0 0.0
    %1067 = vmatpush1.msra.mxu0 0.0
    %1068 = vmatprep.subr.mxu0 0.0
    %1069 = vmatpush1.msra.mxu0 0.0
    %1070 = vmatprep.subr.mxu0 0.0
    %1071 = vmatpush1.msra.mxu0 0.0
    %1072 = vmatprep.subr.mxu0 0.0
    %1073 = vmatpush1.msra.mxu0 0.0
    %1074 = vmatprep.subr.mxu0 0.0
    %1075 = vmatpush1.msra.mxu0 0.0
    %1076 = vmatprep.subr.mxu0 0.0
    %1077 = vmatpush1.msra.mxu0 0.0
    %1078 = vmatprep.subr.mxu0 0.0
    %1079 = vmatpush1.msra.mxu0 0.0
    %1080 = vmatprep.subr.mxu0 0.0
    %1081 = vmatpush1.msra.mxu0 0.0
    %1082 = vmatprep.subr.mxu0 0.0
    %1083 = vmatpush1.msra.mxu0 0.0
    %1084 = vmatprep.subr.mxu0 0.0
    %1085 = vmatpush1.msra.mxu0 0.0
    %1086 = vmatprep.subr.mxu0 0.0
    %1087 = vmatpush1.msra.mxu0 0.0
    %1088 = vmatprep.subr.mxu0 0.0
    %1089 = vmatpush1.msra.mxu0 0.0
    %1090 = vmatprep.mubr.f32.mxu0 0.0
    %1091 = vmatmul.mubr.f32.gmra.mrb[0].mxu0 %v1021
    %v1092 = vpop.f32.mrb[0].mxu0
    %v1093 = vadd.f32 %v1018, %v1092
    %v1094 = vpop.f32.mrb[0].mxu0
    %1095 = vmatprep.mubr.f32.mxu0 0.0
    %1096 = vmatmul.mubr.f32.gmra.mrb[0].mxu0 %v1024
    %v1097 = vpop.f32.mrb[0].mxu0
    %v1098 = vadd.f32 %v1018, %v1097
    %v1099 = vpop.f32.mrb[0].mxu0
    %1100 = vdwg.mxu0
    %v1101 = vadd.f32 %v896, %v1093
    %v1102 = vadd.f32 %v897, %v1098
    %v1103 = vld [vmem:[%s5 + $0xa] sm:$0x1]
    %v1104 = vld [vmem:[%s5 + $0xb] sm:$0x1]
    %v1105 = vsel %vm62, %v1101, 0.0
    %1106 = vadd.xlane.f32.xlu0 %v1105
    %v1107 = vpop.xlane.xlu0 %1106
    %v1108 = vsel %vm62, %v1102, 0.0
    %1109 = vadd.xlane.f32.xlu0 %v1108
    %v1110 = vpop.xlane.xlu0 %1109
    %v1111 = vmul.f32 %v1107, %v69
    %v1112 = vmul.f32 %v1110, %v69
    %v1113 = vmul.f32 %v1101, %v1101
    %v1114 = vmul.f32 %v1102, %v1102
    %v1115 = vsel %vm62, %v1113, 0.0
    %1116 = vadd.xlane.f32.xlu0 %v1115
    %v1117 = vpop.xlane.xlu0 %1116
    %v1118 = vsel %vm62, %v1114, 0.0
    %1119 = vadd.xlane.f32.xlu0 %v1118
    %v1120 = vpop.xlane.xlu0 %1119
    %v1121 = vmul.f32 %v1117, %v69
    %v1122 = vmul.f32 %v1120, %v69
    %v1123 = vmul.f32 %v1111, %v1111
    %v1124 = vmul.f32 %v1112, %v1112
    %v1125 = vsub.f32 %v1121, %v1123
    %v1126 = vsub.f32 %v1122, %v1124
    %v1127 = vmax.f32 %v1125, 0.0
    %v1128 = vmax.f32 %v1126, 0.0
    %v1129 = vsub.f32 %v1101, %v1111
    %v1130 = vsub.f32 %v1102, %v1112
    %v1131 = vadd.f32 %v1127, 1e-12
    %v1132 = vadd.f32 %v1128, 1e-12
    %v1133 = vrsqrt.pop %v1131
    %v1134 = vrsqrt.pop %v1132
    %v1135 = vmul.f32 %v1129, %v1133
    %v1136 = vmul.f32 %v1130, %v1134
    %v1137 = vlaneseq
    %v1138 = vshrl.u32 %v1137, 7
    %v1139 = vsub.s32 0, %v1138
    %v1140 = vrot.slane %v1103, %v1139
    %v1141 = vmul.f32 %v1135, %v1140
    %v1142 = vmul.f32 %v1136, %v1140
    %v1143 = vlaneseq
    %v1144 = vshrl.u32 %v1143, 7
    %v1145 = vsub.s32 0, %v1144
    %v1146 = vrot.slane %v1104, %v1145
    %v1147 = vadd.f32 %v1141, %v1146
    %v1148 = vadd.f32 %v1142, %v1146
    %s1149 = scalar_lea.vmem [#allocation2], 128
    %v1150 = vld [vmem:[%s1149] sm:$0xff]
    %v1151 = vld [vmem:[%s1149 + $0x8] sm:$0xff]
    %v1152 = vld [vmem:[%s1149 + $0x10] sm:$0xff]
    %v1153 = vld [vmem:[%s1149 + $0x18] sm:$0xff]
    %v1154 = vld [vmem:[%s5 + $0xc] sm:$0x1]
    %v1155 = vlaneseq
    %v1156 = vshrl.u32 %v1155, 7
    %v1157 = vsub.s32 0, %v1156
    %v1158 = vrot.slane %v1154, %v1157
    %v1160 = vsel %vm62, %v1147, 0
    %v1163 = vsel %vm62, %v1148, 0
    %1165 = vmatprep.subr.mxu0 0.0
    %1166 = vmatpush1.msra.mxu0 %v1150
    %1167 = vmatprep.subr.mxu0 0.0
    %1168 = vmatpush1.msra.mxu0 %v1151
    %1169 = vmatprep.subr.mxu0 0.0
    %1170 = vmatpush1.msra.mxu0 %v1152
    %1171 = vmatprep.subr.mxu0 0.0
    %1172 = vmatpush1.msra.mxu0 %v1153
    %1173 = vmatprep.subr.mxu0 0.0
    %1174 = vmatpush1.msra.mxu0 0.0
    %1175 = vmatprep.subr.mxu0 0.0
    %1176 = vmatpush1.msra.mxu0 0.0
    %1177 = vmatprep.subr.mxu0 0.0
    %1178 = vmatpush1.msra.mxu0 0.0
    %1179 = vmatprep.subr.mxu0 0.0
    %1180 = vmatpush1.msra.mxu0 0.0
    %1181 = vmatprep.subr.mxu0 0.0
    %1182 = vmatpush1.msra.mxu0 0.0
    %1183 = vmatprep.subr.mxu0 0.0
    %1184 = vmatpush1.msra.mxu0 0.0
    %1185 = vmatprep.subr.mxu0 0.0
    %1186 = vmatpush1.msra.mxu0 0.0
    %1187 = vmatprep.subr.mxu0 0.0
    %1188 = vmatpush1.msra.mxu0 0.0
    %1189 = vmatprep.subr.mxu0 0.0
    %1190 = vmatpush1.msra.mxu0 0.0
    %1191 = vmatprep.subr.mxu0 0.0
    %1192 = vmatpush1.msra.mxu0 0.0
    %1193 = vmatprep.subr.mxu0 0.0
    %1194 = vmatpush1.msra.mxu0 0.0
    %1195 = vmatprep.subr.mxu0 0.0
    %1196 = vmatpush1.msra.mxu0 0.0
    %1197 = vmatprep.subr.mxu0 0.0
    %1198 = vmatpush1.msra.mxu0 0.0
    %1199 = vmatprep.subr.mxu0 0.0
    %1200 = vmatpush1.msra.mxu0 0.0
    %1201 = vmatprep.subr.mxu0 0.0
    %1202 = vmatpush1.msra.mxu0 0.0
    %1203 = vmatprep.subr.mxu0 0.0
    %1204 = vmatpush1.msra.mxu0 0.0
    %1205 = vmatprep.subr.mxu0 0.0
    %1206 = vmatpush1.msra.mxu0 0.0
    %1207 = vmatprep.subr.mxu0 0.0
    %1208 = vmatpush1.msra.mxu0 0.0
    %1209 = vmatprep.subr.mxu0 0.0
    %1210 = vmatpush1.msra.mxu0 0.0
    %1211 = vmatprep.subr.mxu0 0.0
    %1212 = vmatpush1.msra.mxu0 0.0
    %1213 = vmatprep.subr.mxu0 0.0
    %1214 = vmatpush1.msra.mxu0 0.0
    %1215 = vmatprep.subr.mxu0 0.0
    %1216 = vmatpush1.msra.mxu0 0.0
    %1217 = vmatprep.subr.mxu0 0.0
    %1218 = vmatpush1.msra.mxu0 0.0
    %1219 = vmatprep.subr.mxu0 0.0
    %1220 = vmatpush1.msra.mxu0 0.0
    %1221 = vmatprep.subr.mxu0 0.0
    %1222 = vmatpush1.msra.mxu0 0.0
    %1223 = vmatprep.subr.mxu0 0.0
    %1224 = vmatpush1.msra.mxu0 0.0
    %1225 = vmatprep.subr.mxu0 0.0
    %1226 = vmatpush1.msra.mxu0 0.0
    %1227 = vmatprep.subr.mxu0 0.0
    %1228 = vmatpush1.msra.mxu0 0.0
    %1229 = vmatprep.mubr.f32.mxu0 0.0
    %1230 = vmatmul.mubr.f32.gmra.mrb[0].mxu0 %v1160
    %v1231 = vpop.f32.mrb[0].mxu0
    %v1232 = vadd.f32 %v1158, %v1231
    %v1233 = vpop.f32.mrb[0].mxu0
    %1234 = vmatprep.mubr.f32.mxu0 0.0
    %1235 = vmatmul.mubr.f32.gmra.mrb[0].mxu0 %v1163
    %v1236 = vpop.f32.mrb[0].mxu0
    %v1237 = vadd.f32 %v1158, %v1236
    %v1238 = vpop.f32.mrb[0].mxu0
    %1239 = vdwg.mxu0
    %s1240 = scalar_lea.vmem [#allocation2], 160
    %v1241 = vld [vmem:[%s1240] sm:$0xff]
    %v1242 = vld [vmem:[%s1240 + $0x8] sm:$0xff]
    %v1243 = vld [vmem:[%s1240 + $0x10] sm:$0xff]
    %v1244 = vld [vmem:[%s1240 + $0x18] sm:$0xff]
    %v1245 = vld [vmem:[%s5 + $0xd] sm:$0x1]
    %v1246 = vlaneseq
    %v1247 = vshrl.u32 %v1246, 7
    %v1248 = vsub.s32 0, %v1247
    %v1249 = vrot.slane %v1245, %v1248
    %1250 = vmatprep.subr.mxu0 0.0
    %1251 = vmatpush1.msra.mxu0 %v1241
    %1252 = vmatprep.subr.mxu0 0.0
    %1253 = vmatpush1.msra.mxu0 %v1242
    %1254 = vmatprep.subr.mxu0 0.0
    %1255 = vmatpush1.msra.mxu0 %v1243
    %1256 = vmatprep.subr.mxu0 0.0
    %1257 = vmatpush1.msra.mxu0 %v1244
    %1258 = vmatprep.subr.mxu0 0.0
    %1259 = vmatpush1.msra.mxu0 0.0
    %1260 = vmatprep.subr.mxu0 0.0
    %1261 = vmatpush1.msra.mxu0 0.0
    %1262 = vmatprep.subr.mxu0 0.0
    %1263 = vmatpush1.msra.mxu0 0.0
    %1264 = vmatprep.subr.mxu0 0.0
    %1265 = vmatpush1.msra.mxu0 0.0
    %1266 = vmatprep.subr.mxu0 0.0
    %1267 = vmatpush1.msra.mxu0 0.0
    %1268 = vmatprep.subr.mxu0 0.0
    %1269 = vmatpush1.msra.mxu0 0.0
    %1270 = vmatprep.subr.mxu0 0.0
    %1271 = vmatpush1.msra.mxu0 0.0
    %1272 = vmatprep.subr.mxu0 0.0
    %1273 = vmatpush1.msra.mxu0 0.0
    %1274 = vmatprep.subr.mxu0 0.0
    %1275 = vmatpush1.msra.mxu0 0.0
    %1276 = vmatprep.subr.mxu0 0.0
    %1277 = vmatpush1.msra.mxu0 0.0
    %1278 = vmatprep.subr.mxu0 0.0
    %1279 = vmatpush1.msra.mxu0 0.0
    %1280 = vmatprep.subr.mxu0 0.0
    %1281 = vmatpush1.msra.mxu0 0.0
    %1282 = vmatprep.subr.mxu0 0.0
    %1283 = vmatpush1.msra.mxu0 0.0
    %1284 = vmatprep.subr.mxu0 0.0
    %1285 = vmatpush1.msra.mxu0 0.0
    %1286 = vmatprep.subr.mxu0 0.0
    %1287 = vmatpush1.msra.mxu0 0.0
    %1288 = vmatprep.subr.mxu0 0.0
    %1289 = vmatpush1.msra.mxu0 0.0
    %1290 = vmatprep.subr.mxu0 0.0
    %1291 = vmatpush1.msra.mxu0 0.0
    %1292 = vmatprep.subr.mxu0 0.0
    %1293 = vmatpush1.msra.mxu0 0.0
    %1294 = vmatprep.subr.mxu0 0.0
    %1295 = vmatpush1.msra.mxu0 0.0
    %1296 = vmatprep.subr.mxu0 0.0
    %1297 = vmatpush1.msra.mxu0 0.0
    %1298 = vmatprep.subr.mxu0 0.0
    %1299 = vmatpush1.msra.mxu0 0.0
    %1300 = vmatprep.subr.mxu0 0.0
    %1301 = vmatpush1.msra.mxu0 0.0
    %1302 = vmatprep.subr.mxu0 0.0
    %1303 = vmatpush1.msra.mxu0 0.0
    %1304 = vmatprep.subr.mxu0 0.0
    %1305 = vmatpush1.msra.mxu0 0.0
    %1306 = vmatprep.subr.mxu0 0.0
    %1307 = vmatpush1.msra.mxu0 0.0
    %1308 = vmatprep.subr.mxu0 0.0
    %1309 = vmatpush1.msra.mxu0 0.0
    %1310 = vmatprep.subr.mxu0 0.0
    %1311 = vmatpush1.msra.mxu0 0.0
    %1312 = vmatprep.subr.mxu0 0.0
    %1313 = vmatpush1.msra.mxu0 0.0
    %1314 = vmatprep.mubr.f32.mxu0 0.0
    %1315 = vmatmul.mubr.f32.gmra.mrb[0].mxu0 %v1160
    %v1316 = vpop.f32.mrb[0].mxu0
    %v1317 = vadd.f32 %v1249, %v1316
    %v1318 = vpop.f32.mrb[0].mxu0
    %1319 = vmatprep.mubr.f32.mxu0 0.0
    %1320 = vmatmul.mubr.f32.gmra.mrb[0].mxu0 %v1163
    %v1321 = vpop.f32.mrb[0].mxu0
    %v1322 = vadd.f32 %v1249, %v1321
    %v1323 = vpop.f32.mrb[0].mxu0
    %1324 = vdwg.mxu0
    %s1325 = scalar_lea.vmem [#allocation2], 192
    %v1326 = vld [vmem:[%s1325] sm:$0xff]
    %v1327 = vld [vmem:[%s1325 + $0x8] sm:$0xff]
    %v1328 = vld [vmem:[%s1325 + $0x10] sm:$0xff]
    %v1329 = vld [vmem:[%s1325 + $0x18] sm:$0xff]
    %v1330 = vld [vmem:[%s5 + $0xe] sm:$0x1]
    %v1331 = vlaneseq
    %v1332 = vshrl.u32 %v1331, 7
    %v1333 = vsub.s32 0, %v1332
    %v1334 = vrot.slane %v1330, %v1333
    %1335 = vmatprep.subr.mxu0 0.0
    %1336 = vmatpush1.msra.mxu0 %v1326
    %1337 = vmatprep.subr.mxu0 0.0
    %1338 = vmatpush1.msra.mxu0 %v1327
    %1339 = vmatprep.subr.mxu0 0.0
    %1340 = vmatpush1.msra.mxu0 %v1328
    %1341 = vmatprep.subr.mxu0 0.0
    %1342 = vmatpush1.msra.mxu0 %v1329
    %1343 = vmatprep.subr.mxu0 0.0
    %1344 = vmatpush1.msra.mxu0 0.0
    %1345 = vmatprep.subr.mxu0 0.0
    %1346 = vmatpush1.msra.mxu0 0.0
    %1347 = vmatprep.subr.mxu0 0.0
    %1348 = vmatpush1.msra.mxu0 0.0
    %1349 = vmatprep.subr.mxu0 0.0
    %1350 = vmatpush1.msra.mxu0 0.0
    %1351 = vmatprep.subr.mxu0 0.0
    %1352 = vmatpush1.msra.mxu0 0.0
    %1353 = vmatprep.subr.mxu0 0.0
    %1354 = vmatpush1.msra.mxu0 0.0
    %1355 = vmatprep.subr.mxu0 0.0
    %1356 = vmatpush1.msra.mxu0 0.0
    %1357 = vmatprep.subr.mxu0 0.0
    %1358 = vmatpush1.msra.mxu0 0.0
    %1359 = vmatprep.subr.mxu0 0.0
    %1360 = vmatpush1.msra.mxu0 0.0
    %1361 = vmatprep.subr.mxu0 0.0
    %1362 = vmatpush1.msra.mxu0 0.0
    %1363 = vmatprep.subr.mxu0 0.0
    %1364 = vmatpush1.msra.mxu0 0.0
    %1365 = vmatprep.subr.mxu0 0.0
    %1366 = vmatpush1.msra.mxu0 0.0
    %1367 = vmatprep.subr.mxu0 0.0
    %1368 = vmatpush1.msra.mxu0 0.0
    %1369 = vmatprep.subr.mxu0 0.0
    %1370 = vmatpush1.msra.mxu0 0.0
    %1371 = vmatprep.subr.mxu0 0.0
    %1372 = vmatpush1.msra.mxu0 0.0
    %1373 = vmatprep.subr.mxu0 0.0
    %1374 = vmatpush1.msra.mxu0 0.0
    %1375 = vmatprep.subr.mxu0 0.0
    %1376 = vmatpush1.msra.mxu0 0.0
    %1377 = vmatprep.subr.mxu0 0.0
    %1378 = vmatpush1.msra.mxu0 0.0
    %1379 = vmatprep.subr.mxu0 0.0
    %1380 = vmatpush1.msra.mxu0 0.0
    %1381 = vmatprep.subr.mxu0 0.0
    %1382 = vmatpush1.msra.mxu0 0.0
    %1383 = vmatprep.subr.mxu0 0.0
    %1384 = vmatpush1.msra.mxu0 0.0
    %1385 = vmatprep.subr.mxu0 0.0
    %1386 = vmatpush1.msra.mxu0 0.0
    %1387 = vmatprep.subr.mxu0 0.0
    %1388 = vmatpush1.msra.mxu0 0.0
    %1389 = vmatprep.subr.mxu0 0.0
    %1390 = vmatpush1.msra.mxu0 0.0
    %1391 = vmatprep.subr.mxu0 0.0
    %1392 = vmatpush1.msra.mxu0 0.0
    %1393 = vmatprep.subr.mxu0 0.0
    %1394 = vmatpush1.msra.mxu0 0.0
    %1395 = vmatprep.subr.mxu0 0.0
    %1396 = vmatpush1.msra.mxu0 0.0
    %1397 = vmatprep.subr.mxu0 0.0
    %1398 = vmatpush1.msra.mxu0 0.0
    %1399 = vmatprep.mubr.f32.mxu0 0.0
    %1400 = vmatmul.mubr.f32.gmra.mrb[0].mxu0 %v1160
    %v1401 = vpop.f32.mrb[0].mxu0
    %v1402 = vadd.f32 %v1334, %v1401
    %v1403 = vpop.f32.mrb[0].mxu0
    %1404 = vmatprep.mubr.f32.mxu0 0.0
    %1405 = vmatmul.mubr.f32.gmra.mrb[0].mxu0 %v1163
    %v1406 = vpop.f32.mrb[0].mxu0
    %v1407 = vadd.f32 %v1334, %v1406
    %v1408 = vpop.f32.mrb[0].mxu0
    %1409 = vdwg.mxu0
    %v1410 = vmul.f32 %v1232, %v50
    %v1411 = vmul.f32 %v1237, %v50
    %v1413 = vsel %vm62, %v1410, 0
    %v1416 = vsel %vm62, %v1411, 0
    %v1419 = vsel %vm62, %v1317, 0
    %v1422 = vsel %vm62, %v1322, 0
    %1424 = vmatprep.subr.mxu0 0.0
    %1425 = vmatpush1.xpose.msra.mxu0 %v1419
    %1426 = vmatprep.subr.mxu0 0.0
    %1427 = vmatpush1.xpose.msra.mxu0 %v1422
    %1428 = vmatprep.subr.mxu0 0.0
    %1429 = vmatpush1.xpose.msra.mxu0 0.0
    %1430 = vmatprep.subr.mxu0 0.0
    %1431 = vmatpush1.xpose.msra.mxu0 0.0
    %1432 = vmatprep.subr.mxu0 0.0
    %1433 = vmatpush1.xpose.msra.mxu0 0.0
    %1434 = vmatprep.subr.mxu0 0.0
    %1435 = vmatpush1.xpose.msra.mxu0 0.0
    %1436 = vmatprep.subr.mxu0 0.0
    %1437 = vmatpush1.xpose.msra.mxu0 0.0
    %1438 = vmatprep.subr.mxu0 0.0
    %1439 = vmatpush1.xpose.msra.mxu0 0.0
    %1440 = vmatprep.subr.mxu0 0.0
    %1441 = vmatpush1.xpose.msra.mxu0 0.0
    %1442 = vmatprep.subr.mxu0 0.0
    %1443 = vmatpush1.xpose.msra.mxu0 0.0
    %1444 = vmatprep.subr.mxu0 0.0
    %1445 = vmatpush1.xpose.msra.mxu0 0.0
    %1446 = vmatprep.subr.mxu0 0.0
    %1447 = vmatpush1.xpose.msra.mxu0 0.0
    %1448 = vmatprep.subr.mxu0 0.0
    %1449 = vmatpush1.xpose.msra.mxu0 0.0
    %1450 = vmatprep.subr.mxu0 0.0
    %1451 = vmatpush1.xpose.msra.mxu0 0.0
    %1452 = vmatprep.subr.mxu0 0.0
    %1453 = vmatpush1.xpose.msra.mxu0 0.0
    %1454 = vmatprep.subr.mxu0 0.0
    %1455 = vmatpush1.xpose.msra.mxu0 0.0
    %1456 = vmatprep.subr.mxu0 0.0
    %1457 = vmatpush1.xpose.msra.mxu0 0.0
    %1458 = vmatprep.subr.mxu0 0.0
    %1459 = vmatpush1.xpose.msra.mxu0 0.0
    %1460 = vmatprep.subr.mxu0 0.0
    %1461 = vmatpush1.xpose.msra.mxu0 0.0
    %1462 = vmatprep.subr.mxu0 0.0
    %1463 = vmatpush1.xpose.msra.mxu0 0.0
    %1464 = vmatprep.subr.mxu0 0.0
    %1465 = vmatpush1.xpose.msra.mxu0 0.0
    %1466 = vmatprep.subr.mxu0 0.0
    %1467 = vmatpush1.xpose.msra.mxu0 0.0
    %1468 = vmatprep.subr.mxu0 0.0
    %1469 = vmatpush1.xpose.msra.mxu0 0.0
    %1470 = vmatprep.subr.mxu0 0.0
    %1471 = vmatpush1.xpose.msra.mxu0 0.0
    %1472 = vmatprep.subr.mxu0 0.0
    %1473 = vmatpush1.xpose.msra.mxu0 0.0
    %1474 = vmatprep.subr.mxu0 0.0
    %1475 = vmatpush1.xpose.msra.mxu0 0.0
    %1476 = vmatprep.subr.mxu0 0.0
    %1477 = vmatpush1.xpose.msra.mxu0 0.0
    %1478 = vmatprep.subr.mxu0 0.0
    %1479 = vmatpush1.xpose.msra.mxu0 0.0
    %1480 = vmatprep.subr.mxu0 0.0
    %1481 = vmatpush1.xpose.msra.mxu0 0.0
    %1482 = vmatprep.subr.mxu0 0.0
    %1483 = vmatpush1.xpose.msra.mxu0 0.0
    %1484 = vmatprep.subr.mxu0 0.0
    %1485 = vmatpush1.xpose.msra.mxu0 0.0
    %1486 = vmatprep.subr.mxu0 0.0
    %1487 = vmatpush1.xpose.msra.mxu0 0.0
    %1488 = vmatprep.mubr.f32.mxu0 0.0
    %1489 = vmatmul.mubr.f32.gmra.mrb[0].mxu0 %v1413
    %v1490 = vpop.f32.mrb[0].mxu0
    %v1491 = vadd.f32 0.0, %v1490
    %v1492 = vpop.f32.mrb[0].mxu0
    %1493 = vmatprep.mubr.f32.mxu0 0.0
    %1494 = vmatmul.mubr.f32.gmra.mrb[0].mxu0 %v1416
    %v1495 = vpop.f32.mrb[0].mxu0
    %v1496 = vadd.f32 0.0, %v1495
    %v1497 = vpop.f32.mrb[0].mxu0
    %1498 = vdwg.mxu0
    %v1499 = vmul.f32 %v1491, 0.25
    %v1500 = vmul.f32 %v1496, 0.25
    %v1501 = vadd.f32 %v1499, %v56
    %v1502 = vadd.f32 %v1500, %v57
    %v1503 = vsel %vm461, %v1501, -inf
    %1504 = vmax.xlane.f32.xlu0 %v1503
    %v1505 = vpop.xlane.xlu0 %1504
    %v1506 = vsel %vm461, %v1502, -inf
    %1507 = vmax.xlane.f32.xlu0 %v1506
    %v1508 = vpop.xlane.xlu0 %1507
    %v1509 = vsub.f32 %v1501, %v1505
    %v1510 = vsub.f32 %v1502, %v1508
    %v1511 = vmul.f32 %v1509, 1.442695
    %v1512 = vpow.pop %v1511
    %v1513 = vmul.f32 %v1510, 1.442695
    %v1514 = vpow.pop %v1513
    %v1515 = vsel %vm461, %v1512, 0.0
    %1516 = vadd.xlane.f32.xlu0 %v1515
    %v1517 = vpop.xlane.xlu0 %1516
    %v1518 = vsel %vm461, %v1514, 0.0
    %1519 = vadd.xlane.f32.xlu0 %v1518
    %v1520 = vpop.xlane.xlu0 %1519
    %v1521 = vrcp.pop %v1517
    %v1522 = vrcp.pop %v1520
    %v1523 = vmul.f32 %v1512, %v1521
    %v1524 = vmul.f32 %v1514, %v1522
    %v1525 = vmul.f32 %v1402, %v50
    %v1526 = vmul.f32 %v1407, %v50
    %v1527 = vmul.f32 %v1232, %v55
    %v1528 = vmul.f32 %v1237, %v55
    %v1530 = vsel %vm62, %v1527, 0
    %v1533 = vsel %vm62, %v1528, 0
    %1535 = vmatprep.subr.mxu0 0.0
    %1536 = vmatpush1.xpose.msra.mxu0 %v1419
    %1537 = vmatprep.subr.mxu0 0.0
    %1538 = vmatpush1.xpose.msra.mxu0 %v1422
    %1539 = vmatprep.subr.mxu0 0.0
    %1540 = vmatpush1.xpose.msra.mxu0 0.0
    %1541 = vmatprep.subr.mxu0 0.0
    %1542 = vmatpush1.xpose.msra.mxu0 0.0
    %1543 = vmatprep.subr.mxu0 0.0
    %1544 = vmatpush1.xpose.msra.mxu0 0.0
    %1545 = vmatprep.subr.mxu0 0.0
    %1546 = vmatpush1.xpose.msra.mxu0 0.0
    %1547 = vmatprep.subr.mxu0 0.0
    %1548 = vmatpush1.xpose.msra.mxu0 0.0
    %1549 = vmatprep.subr.mxu0 0.0
    %1550 = vmatpush1.xpose.msra.mxu0 0.0
    %1551 = vmatprep.subr.mxu0 0.0
    %1552 = vmatpush1.xpose.msra.mxu0 0.0
    %1553 = vmatprep.subr.mxu0 0.0
    %1554 = vmatpush1.xpose.msra.mxu0 0.0
    %1555 = vmatprep.subr.mxu0 0.0
    %1556 = vmatpush1.xpose.msra.mxu0 0.0
    %1557 = vmatprep.subr.mxu0 0.0
    %1558 = vmatpush1.xpose.msra.mxu0 0.0
    %1559 = vmatprep.subr.mxu0 0.0
    %1560 = vmatpush1.xpose.msra.mxu0 0.0
    %1561 = vmatprep.subr.mxu0 0.0
    %1562 = vmatpush1.xpose.msra.mxu0 0.0
    %1563 = vmatprep.subr.mxu0 0.0
    %1564 = vmatpush1.xpose.msra.mxu0 0.0
    %1565 = vmatprep.subr.mxu0 0.0
    %1566 = vmatpush1.xpose.msra.mxu0 0.0
    %1567 = vmatprep.subr.mxu0 0.0
    %1568 = vmatpush1.xpose.msra.mxu0 0.0
    %1569 = vmatprep.subr.mxu0 0.0
    %1570 = vmatpush1.xpose.msra.mxu0 0.0
    %1571 = vmatprep.subr.mxu0 0.0
    %1572 = vmatpush1.xpose.msra.mxu0 0.0
    %1573 = vmatprep.subr.mxu0 0.0
    %1574 = vmatpush1.xpose.msra.mxu0 0.0
    %1575 = vmatprep.subr.mxu0 0.0
    %1576 = vmatpush1.xpose.msra.mxu0 0.0
    %1577 = vmatprep.subr.mxu0 0.0
    %1578 = vmatpush1.xpose.msra.mxu0 0.0
    %1579 = vmatprep.subr.mxu0 0.0
    %1580 = vmatpush1.xpose.msra.mxu0 0.0
    %1581 = vmatprep.subr.mxu0 0.0
    %1582 = vmatpush1.xpose.msra.mxu0 0.0
    %1583 = vmatprep.subr.mxu0 0.0
    %1584 = vmatpush1.xpose.msra.mxu0 0.0
    %1585 = vmatprep.subr.mxu0 0.0
    %1586 = vmatpush1.xpose.msra.mxu0 0.0
    %1587 = vmatprep.subr.mxu0 0.0
    %1588 = vmatpush1.xpose.msra.mxu0 0.0
    %1589 = vmatprep.subr.mxu0 0.0
    %1590 = vmatpush1.xpose.msra.mxu0 0.0
    %1591 = vmatprep.subr.mxu0 0.0
    %1592 = vmatpush1.xpose.msra.mxu0 0.0
    %1593 = vmatprep.subr.mxu0 0.0
    %1594 = vmatpush1.xpose.msra.mxu0 0.0
    %1595 = vmatprep.subr.mxu0 0.0
    %1596 = vmatpush1.xpose.msra.mxu0 0.0
    %1597 = vmatprep.subr.mxu0 0.0
    %1598 = vmatpush1.xpose.msra.mxu0 0.0
    %1599 = vmatprep.mubr.f32.mxu0 0.0
    %1600 = vmatmul.mubr.f32.gmra.mrb[0].mxu0 %v1530
    %v1601 = vpop.f32.mrb[0].mxu0
    %v1602 = vadd.f32 0.0, %v1601
    %v1603 = vpop.f32.mrb[0].mxu0
    %1604 = vmatprep.mubr.f32.mxu0 0.0
    %1605 = vmatmul.mubr.f32.gmra.mrb[0].mxu0 %v1533
    %v1606 = vpop.f32.mrb[0].mxu0
    %v1607 = vadd.f32 0.0, %v1606
    %v1608 = vpop.f32.mrb[0].mxu0
    %1609 = vdwg.mxu0
    %v1610 = vmul.f32 %v1602, 0.25
    %v1611 = vmul.f32 %v1607, 0.25
    %v1612 = vadd.f32 %v1610, %v56
    %v1613 = vadd.f32 %v1611, %v57
    %v1614 = vsel %vm461, %v1612, -inf
    %1615 = vmax.xlane.f32.xlu0 %v1614
    %v1616 = vpop.xlane.xlu0 %1615
    %v1617 = vsel %vm461, %v1613, -inf
    %1618 = vmax.xlane.f32.xlu0 %v1617
    %v1619 = vpop.xlane.xlu0 %1618
    %v1620 = vsub.f32 %v1612, %v1616
    %v1621 = vsub.f32 %v1613, %v1619
    %v1622 = vmul.f32 %v1620, 1.442695
    %v1623 = vpow.pop %v1622
    %v1624 = vmul.f32 %v1621, 1.442695
    %v1625 = vpow.pop %v1624
    %v1626 = vsel %vm461, %v1623, 0.0
    %1627 = vadd.xlane.f32.xlu0 %v1626
    %v1628 = vpop.xlane.xlu0 %1627
    %v1629 = vsel %vm461, %v1625, 0.0
    %1630 = vadd.xlane.f32.xlu0 %v1629
    %v1631 = vpop.xlane.xlu0 %1630
    %v1632 = vrcp.pop %v1628
    %v1633 = vrcp.pop %v1631
    %v1634 = vmul.f32 %v1623, %v1632
    %v1635 = vmul.f32 %v1625, %v1633
    %v1636 = vmul.f32 %v1402, %v55
    %v1637 = vmul.f32 %v1407, %v55
    %v1639 = vsel %vm461, %v1634, 0
    %v1642 = vsel %vm461, %v1635, 0
    %1644 = vmatprep.subr.mxu0 0.0
    %1645 = vmatpush1.msra.mxu0 %v1636
    %1646 = vmatprep.subr.mxu0 0.0
    %1647 = vmatpush1.msra.mxu0 %v1637
    %1648 = vmatprep.subr.mxu0 0.0
    %1649 = vmatpush1.msra.mxu0 0.0
    %1650 = vmatprep.subr.mxu0 0.0
    %1651 = vmatpush1.msra.mxu0 0.0
    %1652 = vmatprep.subr.mxu0 0.0
    %1653 = vmatpush1.msra.mxu0 0.0
    %1654 = vmatprep.subr.mxu0 0.0
    %1655 = vmatpush1.msra.mxu0 0.0
    %1656 = vmatprep.subr.mxu0 0.0
    %1657 = vmatpush1.msra.mxu0 0.0
    %1658 = vmatprep.subr.mxu0 0.0
    %1659 = vmatpush1.msra.mxu0 0.0
    %1660 = vmatprep.subr.mxu0 0.0
    %1661 = vmatpush1.msra.mxu0 0.0
    %1662 = vmatprep.subr.mxu0 0.0
    %1663 = vmatpush1.msra.mxu0 0.0
    %1664 = vmatprep.subr.mxu0 0.0
    %1665 = vmatpush1.msra.mxu0 0.0
    %1666 = vmatprep.subr.mxu0 0.0
    %1667 = vmatpush1.msra.mxu0 0.0
    %1668 = vmatprep.subr.mxu0 0.0
    %1669 = vmatpush1.msra.mxu0 0.0
    %1670 = vmatprep.subr.mxu0 0.0
    %1671 = vmatpush1.msra.mxu0 0.0
    %1672 = vmatprep.subr.mxu0 0.0
    %1673 = vmatpush1.msra.mxu0 0.0
    %1674 = vmatprep.subr.mxu0 0.0
    %1675 = vmatpush1.msra.mxu0 0.0
    %1676 = vmatprep.subr.mxu0 0.0
    %1677 = vmatpush1.msra.mxu0 0.0
    %1678 = vmatprep.subr.mxu0 0.0
    %1679 = vmatpush1.msra.mxu0 0.0
    %1680 = vmatprep.subr.mxu0 0.0
    %1681 = vmatpush1.msra.mxu0 0.0
    %1682 = vmatprep.subr.mxu0 0.0
    %1683 = vmatpush1.msra.mxu0 0.0
    %1684 = vmatprep.subr.mxu0 0.0
    %1685 = vmatpush1.msra.mxu0 0.0
    %1686 = vmatprep.subr.mxu0 0.0
    %1687 = vmatpush1.msra.mxu0 0.0
    %1688 = vmatprep.subr.mxu0 0.0
    %1689 = vmatpush1.msra.mxu0 0.0
    %1690 = vmatprep.subr.mxu0 0.0
    %1691 = vmatpush1.msra.mxu0 0.0
    %1692 = vmatprep.subr.mxu0 0.0
    %1693 = vmatpush1.msra.mxu0 0.0
    %1694 = vmatprep.subr.mxu0 0.0
    %1695 = vmatpush1.msra.mxu0 0.0
    %1696 = vmatprep.subr.mxu0 0.0
    %1697 = vmatpush1.msra.mxu0 0.0
    %1698 = vmatprep.subr.mxu0 0.0
    %1699 = vmatpush1.msra.mxu0 0.0
    %1700 = vmatprep.subr.mxu0 0.0
    %1701 = vmatpush1.msra.mxu0 0.0
    %1702 = vmatprep.subr.mxu0 0.0
    %1703 = vmatpush1.msra.mxu0 0.0
    %1704 = vmatprep.subr.mxu0 0.0
    %1705 = vmatpush1.msra.mxu0 0.0
    %1706 = vmatprep.subr.mxu0 0.0
    %1707 = vmatpush1.msra.mxu0 0.0
    %1708 = vmatprep.mubr.f32.mxu0 0.0
    %1709 = vmatmul.mubr.f32.gmra.mrb[0].mxu0 %v1639
    %v1710 = vpop.f32.mrb[0].mxu0
    %v1711 = vadd.f32 0.0, %v1710
    %v1712 = vpop.f32.mrb[0].mxu0
    %1713 = vmatprep.mubr.f32.mxu0 0.0
    %1714 = vmatmul.mubr.f32.gmra.mrb[0].mxu0 %v1642
    %v1715 = vpop.f32.mrb[0].mxu0
    %v1716 = vadd.f32 0.0, %v1715
    %v1717 = vpop.f32.mrb[0].mxu0
    %1718 = vdwg.mxu0
    %v1720 = vsel %vm461, %v1523, 0
    %v1723 = vsel %vm461, %v1524, 0
    %1725 = vmatprep.subr.mxu0 0.0
    %1726 = vmatpush1.msra.mxu0 %v1525
    %1727 = vmatprep.subr.mxu0 0.0
    %1728 = vmatpush1.msra.mxu0 %v1526
    %1729 = vmatprep.subr.mxu0 0.0
    %1730 = vmatpush1.msra.mxu0 0.0
    %1731 = vmatprep.subr.mxu0 0.0
    %1732 = vmatpush1.msra.mxu0 0.0
    %1733 = vmatprep.subr.mxu0 0.0
    %1734 = vmatpush1.msra.mxu0 0.0
    %1735 = vmatprep.subr.mxu0 0.0
    %1736 = vmatpush1.msra.mxu0 0.0
    %1737 = vmatprep.subr.mxu0 0.0
    %1738 = vmatpush1.msra.mxu0 0.0
    %1739 = vmatprep.subr.mxu0 0.0
    %1740 = vmatpush1.msra.mxu0 0.0
    %1741 = vmatprep.subr.mxu0 0.0
    %1742 = vmatpush1.msra.mxu0 0.0
    %1743 = vmatprep.subr.mxu0 0.0
    %1744 = vmatpush1.msra.mxu0 0.0
    %1745 = vmatprep.subr.mxu0 0.0
    %1746 = vmatpush1.msra.mxu0 0.0
    %1747 = vmatprep.subr.mxu0 0.0
    %1748 = vmatpush1.msra.mxu0 0.0
    %1749 = vmatprep.subr.mxu0 0.0
    %1750 = vmatpush1.msra.mxu0 0.0
    %1751 = vmatprep.subr.mxu0 0.0
    %1752 = vmatpush1.msra.mxu0 0.0
    %1753 = vmatprep.subr.mxu0 0.0
    %1754 = vmatpush1.msra.mxu0 0.0
    %1755 = vmatprep.subr.mxu0 0.0
    %1756 = vmatpush1.msra.mxu0 0.0
    %1757 = vmatprep.subr.mxu0 0.0
    %1758 = vmatpush1.msra.mxu0 0.0
    %1759 = vmatprep.subr.mxu0 0.0
    %1760 = vmatpush1.msra.mxu0 0.0
    %1761 = vmatprep.subr.mxu0 0.0
    %1762 = vmatpush1.msra.mxu0 0.0
    %1763 = vmatprep.subr.mxu0 0.0
    %1764 = vmatpush1.msra.mxu0 0.0
    %1765 = vmatprep.subr.mxu0 0.0
    %1766 = vmatpush1.msra.mxu0 0.0
    %1767 = vmatprep.subr.mxu0 0.0
    %1768 = vmatpush1.msra.mxu0 0.0
    %1769 = vmatprep.subr.mxu0 0.0
    %1770 = vmatpush1.msra.mxu0 0.0
    %1771 = vmatprep.subr.mxu0 0.0
    %1772 = vmatpush1.msra.mxu0 0.0
    %1773 = vmatprep.subr.mxu0 0.0
    %1774 = vmatpush1.msra.mxu0 0.0
    %1775 = vmatprep.subr.mxu0 0.0
    %1776 = vmatpush1.msra.mxu0 0.0
    %1777 = vmatprep.subr.mxu0 0.0
    %1778 = vmatpush1.msra.mxu0 0.0
    %1779 = vmatprep.subr.mxu0 0.0
    %1780 = vmatpush1.msra.mxu0 0.0
    %1781 = vmatprep.subr.mxu0 0.0
    %1782 = vmatpush1.msra.mxu0 0.0
    %1783 = vmatprep.subr.mxu0 0.0
    %1784 = vmatpush1.msra.mxu0 0.0
    %1785 = vmatprep.subr.mxu0 0.0
    %1786 = vmatpush1.msra.mxu0 0.0
    %1787 = vmatprep.subr.mxu0 0.0
    %1788 = vmatpush1.msra.mxu0 0.0
    %1789 = vmatprep.mubr.f32.mxu0 0.0
    %1790 = vmatmul.mubr.f32.gmra.mrb[0].mxu0 %v1720
    %v1791 = vpop.f32.mrb[0].mxu0
    %v1792 = vadd.f32 %v1711, %v1791
    %v1793 = vpop.f32.mrb[0].mxu0
    %1794 = vmatprep.mubr.f32.mxu0 0.0
    %1795 = vmatmul.mubr.f32.gmra.mrb[0].mxu0 %v1723
    %v1796 = vpop.f32.mrb[0].mxu0
    %v1797 = vadd.f32 %v1716, %v1796
    %v1798 = vpop.f32.mrb[0].mxu0
    %1799 = vdwg.mxu0
    %s1800 = scalar_lea.vmem [#allocation2], 224
    %v1801 = vld [vmem:[%s1800] sm:$0xff]
    %v1802 = vld [vmem:[%s1800 + $0x8] sm:$0xff]
    %v1803 = vld [vmem:[%s1800 + $0x10] sm:$0xff]
    %v1804 = vld [vmem:[%s1800 + $0x18] sm:$0xff]
    %v1805 = vld [vmem:[%s5 + $0xf] sm:$0x1]
    %v1806 = vlaneseq
    %v1807 = vshrl.u32 %v1806, 7
    %v1808 = vsub.s32 0, %v1807
    %v1809 = vrot.slane %v1805, %v1808
    %v1811 = vsel %vm62, %v1792, 0
    %v1814 = vsel %vm62, %v1797, 0
    %1816 = vmatprep.subr.mxu0 0.0
    %1817 = vmatpush1.msra.mxu0 %v1801
    %1818 = vmatprep.subr.mxu0 0.0
    %1819 = vmatpush1.msra.mxu0 %v1802
    %1820 = vmatprep.subr.mxu0 0.0
    %1821 = vmatpush1.msra.mxu0 %v1803
    %1822 = vmatprep.subr.mxu0 0.0
    %1823 = vmatpush1.msra.mxu0 %v1804
    %1824 = vmatprep.subr.mxu0 0.0
    %1825 = vmatpush1.msra.mxu0 0.0
    %1826 = vmatprep.subr.mxu0 0.0
    %1827 = vmatpush1.msra.mxu0 0.0
    %1828 = vmatprep.subr.mxu0 0.0
    %1829 = vmatpush1.msra.mxu0 0.0
    %1830 = vmatprep.subr.mxu0 0.0
    %1831 = vmatpush1.msra.mxu0 0.0
    %1832 = vmatprep.subr.mxu0 0.0
    %1833 = vmatpush1.msra.mxu0 0.0
    %1834 = vmatprep.subr.mxu0 0.0
    %1835 = vmatpush1.msra.mxu0 0.0
    %1836 = vmatprep.subr.mxu0 0.0
    %1837 = vmatpush1.msra.mxu0 0.0
    %1838 = vmatprep.subr.mxu0 0.0
    %1839 = vmatpush1.msra.mxu0 0.0
    %1840 = vmatprep.subr.mxu0 0.0
    %1841 = vmatpush1.msra.mxu0 0.0
    %1842 = vmatprep.subr.mxu0 0.0
    %1843 = vmatpush1.msra.mxu0 0.0
    %1844 = vmatprep.subr.mxu0 0.0
    %1845 = vmatpush1.msra.mxu0 0.0
    %1846 = vmatprep.subr.mxu0 0.0
    %1847 = vmatpush1.msra.mxu0 0.0
    %1848 = vmatprep.subr.mxu0 0.0
    %1849 = vmatpush1.msra.mxu0 0.0
    %1850 = vmatprep.subr.mxu0 0.0
    %1851 = vmatpush1.msra.mxu0 0.0
    %1852 = vmatprep.subr.mxu0 0.0
    %1853 = vmatpush1.msra.mxu0 0.0
    %1854 = vmatprep.subr.mxu0 0.0
    %1855 = vmatpush1.msra.mxu0 0.0
    %1856 = vmatprep.subr.mxu0 0.0
    %1857 = vmatpush1.msra.mxu0 0.0
    %1858 = vmatprep.subr.mxu0 0.0
    %1859 = vmatpush1.msra.mxu0 0.0
    %1860 = vmatprep.subr.mxu0 0.0
    %1861 = vmatpush1.msra.mxu0 0.0
    %1862 = vmatprep.subr.mxu0 0.0
    %1863 = vmatpush1.msra.mxu0 0.0
    %1864 = vmatprep.subr.mxu0 0.0
    %1865 = vmatpush1.msra.mxu0 0.0
    %1866 = vmatprep.subr.mxu0 0.0
    %1867 = vmatpush1.msra.mxu0 0.0
    %1868 = vmatprep.subr.mxu0 0.0
    %1869 = vmatpush1.msra.mxu0 0.0
    %1870 = vmatprep.subr.mxu0 0.0
    %1871 = vmatpush1.msra.mxu0 0.0
    %1872 = vmatprep.subr.mxu0 0.0
    %1873 = vmatpush1.msra.mxu0 0.0
    %1874 = vmatprep.subr.mxu0 0.0
    %1875 = vmatpush1.msra.mxu0 0.0
    %1876 = vmatprep.subr.mxu0 0.0
    %1877 = vmatpush1.msra.mxu0 0.0
    %1878 = vmatprep.subr.mxu0 0.0
    %1879 = vmatpush1.msra.mxu0 0.0
    %1880 = vmatprep.mubr.f32.mxu0 0.0
    %1881 = vmatmul.mubr.f32.gmra.mrb[0].mxu0 %v1811
    %v1882 = vpop.f32.mrb[0].mxu0
    %v1883 = vadd.f32 %v1809, %v1882
    %v1884 = vpop.f32.mrb[0].mxu0
    %1885 = vmatprep.mubr.f32.mxu0 0.0
    %1886 = vmatmul.mubr.f32.gmra.mrb[0].mxu0 %v1814
    %v1887 = vpop.f32.mrb[0].mxu0
    %v1888 = vadd.f32 %v1809, %v1887
    %v1889 = vpop.f32.mrb[0].mxu0
    %1890 = vdwg.mxu0
    %v1891 = vadd.f32 %v1147, %v1883
    %v1892 = vadd.f32 %v1148, %v1888
    %v1893 = vld [vmem:[%s5 + $0x10] sm:$0x1]
    %v1894 = vld [vmem:[%s5 + $0x11] sm:$0x1]
    %v1895 = vsel %vm62, %v1891, 0.0
    %1896 = vadd.xlane.f32.xlu0 %v1895
    %v1897 = vpop.xlane.xlu0 %1896
    %v1898 = vsel %vm62, %v1892, 0.0
    %1899 = vadd.xlane.f32.xlu0 %v1898
    %v1900 = vpop.xlane.xlu0 %1899
    %v1901 = vmul.f32 %v1897, %v69
    %v1902 = vmul.f32 %v1900, %v69
    %v1903 = vmul.f32 %v1891, %v1891
    %v1904 = vmul.f32 %v1892, %v1892
    %v1905 = vsel %vm62, %v1903, 0.0
    %1906 = vadd.xlane.f32.xlu0 %v1905
    %v1907 = vpop.xlane.xlu0 %1906
    %v1908 = vsel %vm62, %v1904, 0.0
    %1909 = vadd.xlane.f32.xlu0 %v1908
    %v1910 = vpop.xlane.xlu0 %1909
    %v1911 = vmul.f32 %v1907, %v69
    %v1912 = vmul.f32 %v1910, %v69
    %v1913 = vmul.f32 %v1901, %v1901
    %v1914 = vmul.f32 %v1902, %v1902
    %v1915 = vsub.f32 %v1911, %v1913
    %v1916 = vsub.f32 %v1912, %v1914
    %v1917 = vmax.f32 %v1915, 0.0
    %v1918 = vmax.f32 %v1916, 0.0
    %v1919 = vsub.f32 %v1891, %v1901
    %v1920 = vsub.f32 %v1892, %v1902
    %v1921 = vadd.f32 %v1917, 1e-12
    %v1922 = vadd.f32 %v1918, 1e-12
    %v1923 = vrsqrt.pop %v1921
    %v1924 = vrsqrt.pop %v1922
    %v1925 = vmul.f32 %v1919, %v1923
    %v1926 = vmul.f32 %v1920, %v1924
    %v1927 = vlaneseq
    %v1928 = vshrl.u32 %v1927, 7
    %v1929 = vsub.s32 0, %v1928
    %v1930 = vrot.slane %v1893, %v1929
    %v1931 = vmul.f32 %v1925, %v1930
    %v1932 = vmul.f32 %v1926, %v1930
    %v1933 = vlaneseq
    %v1934 = vshrl.u32 %v1933, 7
    %v1935 = vsub.s32 0, %v1934
    %v1936 = vrot.slane %v1894, %v1935
    %v1937 = vadd.f32 %v1931, %v1936
    %v1938 = vadd.f32 %v1932, %v1936
    %s1939 = scalar_lea.vmem %s3, 32
    %v1940 = vld [vmem:[%s1939] sm:$0xff]
    %v1941 = vld [vmem:[%s1939 + $0x8] sm:$0xff]
    %v1942 = vld [vmem:[%s1939 + $0x10] sm:$0xff]
    %v1943 = vld [vmem:[%s1939 + $0x18] sm:$0xff]
    %v1944 = vld [vmem:[%s5 + $0x12] sm:$0x1]
    %v1945 = vlaneseq
    %v1946 = vshrl.u32 %v1945, 7
    %v1947 = vsub.s32 0, %v1946
    %v1948 = vrot.slane %v1944, %v1947
    %v1950 = vsel %vm62, %v1937, 0
    %v1953 = vsel %vm62, %v1938, 0
    %1955 = vmatprep.subr.mxu0 0.0
    %1956 = vmatpush1.msra.mxu0 %v1940
    %1957 = vmatprep.subr.mxu0 0.0
    %1958 = vmatpush1.msra.mxu0 %v1941
    %1959 = vmatprep.subr.mxu0 0.0
    %1960 = vmatpush1.msra.mxu0 %v1942
    %1961 = vmatprep.subr.mxu0 0.0
    %1962 = vmatpush1.msra.mxu0 %v1943
    %1963 = vmatprep.subr.mxu0 0.0
    %1964 = vmatpush1.msra.mxu0 0.0
    %1965 = vmatprep.subr.mxu0 0.0
    %1966 = vmatpush1.msra.mxu0 0.0
    %1967 = vmatprep.subr.mxu0 0.0
    %1968 = vmatpush1.msra.mxu0 0.0
    %1969 = vmatprep.subr.mxu0 0.0
    %1970 = vmatpush1.msra.mxu0 0.0
    %1971 = vmatprep.subr.mxu0 0.0
    %1972 = vmatpush1.msra.mxu0 0.0
    %1973 = vmatprep.subr.mxu0 0.0
    %1974 = vmatpush1.msra.mxu0 0.0
    %1975 = vmatprep.subr.mxu0 0.0
    %1976 = vmatpush1.msra.mxu0 0.0
    %1977 = vmatprep.subr.mxu0 0.0
    %1978 = vmatpush1.msra.mxu0 0.0
    %1979 = vmatprep.subr.mxu0 0.0
    %1980 = vmatpush1.msra.mxu0 0.0
    %1981 = vmatprep.subr.mxu0 0.0
    %1982 = vmatpush1.msra.mxu0 0.0
    %1983 = vmatprep.subr.mxu0 0.0
    %1984 = vmatpush1.msra.mxu0 0.0
    %1985 = vmatprep.subr.mxu0 0.0
    %1986 = vmatpush1.msra.mxu0 0.0
    %1987 = vmatprep.subr.mxu0 0.0
    %1988 = vmatpush1.msra.mxu0 0.0
    %1989 = vmatprep.subr.mxu0 0.0
    %1990 = vmatpush1.msra.mxu0 0.0
    %1991 = vmatprep.subr.mxu0 0.0
    %1992 = vmatpush1.msra.mxu0 0.0
    %1993 = vmatprep.subr.mxu0 0.0
    %1994 = vmatpush1.msra.mxu0 0.0
    %1995 = vmatprep.subr.mxu0 0.0
    %1996 = vmatpush1.msra.mxu0 0.0
    %1997 = vmatprep.subr.mxu0 0.0
    %1998 = vmatpush1.msra.mxu0 0.0
    %1999 = vmatprep.subr.mxu0 0.0
    %2000 = vmatpush1.msra.mxu0 0.0
    %2001 = vmatprep.subr.mxu0 0.0
    %2002 = vmatpush1.msra.mxu0 0.0
    %2003 = vmatprep.subr.mxu0 0.0
    %2004 = vmatpush1.msra.mxu0 0.0
    %2005 = vmatprep.subr.mxu0 0.0
    %2006 = vmatpush1.msra.mxu0 0.0
    %2007 = vmatprep.subr.mxu0 0.0
    %2008 = vmatpush1.msra.mxu0 0.0
    %2009 = vmatprep.subr.mxu0 0.0
    %2010 = vmatpush1.msra.mxu0 0.0
    %2011 = vmatprep.subr.mxu0 0.0
    %2012 = vmatpush1.msra.mxu0 0.0
    %2013 = vmatprep.subr.mxu0 0.0
    %2014 = vmatpush1.msra.mxu0 0.0
    %2015 = vmatprep.subr.mxu0 0.0
    %2016 = vmatpush1.msra.mxu0 0.0
    %2017 = vmatprep.subr.mxu0 0.0
    %2018 = vmatpush1.msra.mxu0 0.0
    %2019 = vmatprep.mubr.f32.mxu0 0.0
    %2020 = vmatmul.mubr.f32.gmra.mrb[0].mxu0 %v1950
    %v2021 = vpop.f32.mrb[0].mxu0
    %v2022 = vadd.f32 %v1948, %v2021
    %v2023 = vpop.f32.mrb[0].mxu0
    %2024 = vmatprep.mubr.f32.mxu0 0.0
    %2025 = vmatmul.mubr.f32.gmra.mrb[0].mxu0 %v1953
    %v2026 = vpop.f32.mrb[0].mxu0
    %v2027 = vadd.f32 %v1948, %v2026
    %v2028 = vpop.f32.mrb[0].mxu0
    %2029 = vdwg.mxu0
    %v2030 = vmul.f32 %v2022, 0.5
    %v2031 = vmul.f32 %v2027, 0.5
    %v2032 = vmul.f32 %v2022, 0.044715
    %v2033 = vmul.f32 %v2027, 0.044715
    %v2034 = vmul.f32 %v2032, %v2022
    %v2035 = vmul.f32 %v2033, %v2027
    %v2036 = vmul.f32 %v2034, %v2022
    %v2037 = vmul.f32 %v2035, %v2027
    %v2038 = vadd.f32 %v2022, %v2036
    %v2039 = vadd.f32 %v2027, %v2037
    %v2040 = vmul.f32 %v2038, 0.7978846
    %v2041 = vmul.f32 %v2039, 0.7978846
    %v2042 = vtanh.pop %v2040
    %v2043 = vtanh.pop %v2041
    %v2044 = vadd.f32 %v2042, 1.0
    %v2045 = vadd.f32 %v2043, 1.0
    %v2046 = vmul.f32 %v2030, %v2044
    %v2047 = vmul.f32 %v2031, %v2045
    %s2048 = scalar_lea.vmem %s4, 64
    %v2049 = vld [vmem:[%s2048] sm:$0xff]
    %v2050 = vld [vmem:[%s2048 + $0x8] sm:$0xff]
    %v2051 = vld [vmem:[%s2048 + $0x10] sm:$0xff]
    %v2052 = vld [vmem:[%s2048 + $0x18] sm:$0xff]
    %v2053 = vld [vmem:[%s2048 + $0x20] sm:$0xff]
    %v2054 = vld [vmem:[%s2048 + $0x28] sm:$0xff]
    %v2055 = vld [vmem:[%s2048 + $0x30] sm:$0xff]
    %v2056 = vld [vmem:[%s2048 + $0x38] sm:$0xff]
    %v2057 = vld [vmem:[%s5 + $0x13] sm:$0x1]
    %v2058 = vlaneseq
    %v2059 = vshrl.u32 %v2058, 7
    %v2060 = vsub.s32 0, %v2059
    %v2061 = vrot.slane %v2057, %v2060
    %v2063 = vsel %vm1019, %v2046, 0
    %v2066 = vsel %vm1019, %v2047, 0
    %2068 = vmatprep.subr.mxu0 0.0
    %2069 = vmatpush1.msra.mxu0 %v2049
    %2070 = vmatprep.subr.mxu0 0.0
    %2071 = vmatpush1.msra.mxu0 %v2050
    %2072 = vmatprep.subr.mxu0 0.0
    %2073 = vmatpush1.msra.mxu0 %v2051
    %2074 = vmatprep.subr.mxu0 0.0
    %2075 = vmatpush1.msra.mxu0 %v2052
    %2076 = vmatprep.subr.mxu0 0.0
    %2077 = vmatpush1.msra.mxu0 %v2053
    %2078 = vmatprep.subr.mxu0 0.0
    %2079 = vmatpush1.msra.mxu0 %v2054
    %2080 = vmatprep.subr.mxu0 0.0
    %2081 = vmatpush1.msra.mxu0 %v2055
    %2082 = vmatprep.subr.mxu0 0.0
    %2083 = vmatpush1.msra.mxu0 %v2056
    %2084 = vmatprep.subr.mxu0 0.0
    %2085 = vmatpush1.msra.mxu0 0.0
    %2086 = vmatprep.subr.mxu0 0.0
    %2087 = vmatpush1.msra.mxu0 0.0
    %2088 = vmatprep.subr.mxu0 0.0
    %2089 = vmatpush1.msra.mxu0 0.0
    %2090 = vmatprep.subr.mxu0 0.0
    %2091 = vmatpush1.msra.mxu0 0.0
    %2092 = vmatprep.subr.mxu0 0.0
    %2093 = vmatpush1.msra.mxu0 0.0
    %2094 = vmatprep.subr.mxu0 0.0
    %2095 = vmatpush1.msra.mxu0 0.0
    %2096 = vmatprep.subr.mxu0 0.0
    %2097 = vmatpush1.msra.mxu0 0.0
    %2098 = vmatprep.subr.mxu0 0.0
    %2099 = vmatpush1.msra.mxu0 0.0
    %2100 = vmatprep.subr.mxu0 0.0
    %2101 = vmatpush1.msra.mxu0 0.0
    %2102 = vmatprep.subr.mxu0 0.0
    %2103 = vmatpush1.msra.mxu0 0.0
    %2104 = vmatprep.subr.mxu0 0.0
    %2105 = vmatpush1.msra.mxu0 0.0
    %2106 = vmatprep.subr.mxu0 0.0
    %2107 = vmatpush1.msra.mxu0 0.0
    %2108 = vmatprep.subr.mxu0 0.0
    %2109 = vmatpush1.msra.mxu0 0.0
    %2110 = vmatprep.subr.mxu0 0.0
    %2111 = vmatpush1.msra.mxu0 0.0
    %2112 = vmatprep.subr.mxu0 0.0
    %2113 = vmatpush1.msra.mxu0 0.0
    %2114 = vmatprep.subr.mxu0 0.0
    %2115 = vmatpush1.msra.mxu0 0.0
    %2116 = vmatprep.subr.mxu0 0.0
    %2117 = vmatpush1.msra.mxu0 0.0
    %2118 = vmatprep.subr.mxu0 0.0
    %2119 = vmatpush1.msra.mxu0 0.0
    %2120 = vmatprep.subr.mxu0 0.0
    %2121 = vmatpush1.msra.mxu0 0.0
    %2122 = vmatprep.subr.mxu0 0.0
    %2123 = vmatpush1.msra.mxu0 0.0
    %2124 = vmatprep.subr.mxu0 0.0
    %2125 = vmatpush1.msra.mxu0 0.0
    %2126 = vmatprep.subr.mxu0 0.0
    %2127 = vmatpush1.msra.mxu0 0.0
    %2128 = vmatprep.subr.mxu0 0.0
    %2129 = vmatpush1.msra.mxu0 0.0
    %2130 = vmatprep.subr.mxu0 0.0
    %2131 = vmatpush1.msra.mxu0 0.0
    %2132 = vmatprep.mubr.f32.mxu0 0.0
    %2133 = vmatmul.mubr.f32.gmra.mrb[0].mxu0 %v2063
    %v2134 = vpop.f32.mrb[0].mxu0
    %v2135 = vadd.f32 %v2061, %v2134
    %v2136 = vpop.f32.mrb[0].mxu0
    %2137 = vmatprep.mubr.f32.mxu0 0.0
    %2138 = vmatmul.mubr.f32.gmra.mrb[0].mxu0 %v2066
    %v2139 = vpop.f32.mrb[0].mxu0
    %v2140 = vadd.f32 %v2061, %v2139
    %v2141 = vpop.f32.mrb[0].mxu0
    %2142 = vdwg.mxu0
    %v2143 = vadd.f32 %v1937, %v2135
    %v2144 = vadd.f32 %v1938, %v2140
    %v2145 = vld [vmem:[%s5 + $0x14] sm:$0x1]
    %v2146 = vld [vmem:[%s5 + $0x15] sm:$0x1]
    %v2147 = vsel %vm62, %v2143, 0.0
    %2148 = vadd.xlane.f32.xlu0 %v2147
    %v2149 = vpop.xlane.xlu0 %2148
    %v2150 = vsel %vm62, %v2144, 0.0
    %2151 = vadd.xlane.f32.xlu0 %v2150
    %v2152 = vpop.xlane.xlu0 %2151
    %v2153 = vmul.f32 %v2149, %v69
    %v2154 = vmul.f32 %v2152, %v69
    %v2155 = vmul.f32 %v2143, %v2143
    %v2156 = vmul.f32 %v2144, %v2144
    %v2157 = vsel %vm62, %v2155, 0.0
    %2158 = vadd.xlane.f32.xlu0 %v2157
    %v2159 = vpop.xlane.xlu0 %2158
    %v2160 = vsel %vm62, %v2156, 0.0
    %2161 = vadd.xlane.f32.xlu0 %v2160
    %v2162 = vpop.xlane.xlu0 %2161
    %v2163 = vmul.f32 %v2159, %v69
    %v2164 = vmul.f32 %v2162, %v69
    %v2165 = vmul.f32 %v2153, %v2153
    %v2166 = vmul.f32 %v2154, %v2154
    %v2167 = vsub.f32 %v2163, %v2165
    %v2168 = vsub.f32 %v2164, %v2166
    %v2169 = vmax.f32 %v2167, 0.0
    %v2170 = vmax.f32 %v2168, 0.0
    %v2171 = vsub.f32 %v2143, %v2153
    %v2172 = vsub.f32 %v2144, %v2154
    %v2173 = vadd.f32 %v2169, 1e-12
    %v2174 = vadd.f32 %v2170, 1e-12
    %v2175 = vrsqrt.pop %v2173
    %v2176 = vrsqrt.pop %v2174
    %v2177 = vmul.f32 %v2171, %v2175
    %v2178 = vmul.f32 %v2172, %v2176
    %v2179 = vlaneseq
    %v2180 = vshrl.u32 %v2179, 7
    %v2181 = vsub.s32 0, %v2180
    %v2182 = vrot.slane %v2145, %v2181
    %v2183 = vmul.f32 %v2177, %v2182
    %v2184 = vmul.f32 %v2178, %v2182
    %v2185 = vlaneseq
    %v2186 = vshrl.u32 %v2185, 7
    %v2187 = vsub.s32 0, %v2186
    %v2188 = vrot.slane %v2146, %v2187
    %v2189 = vadd.f32 %v2183, %v2188
    %v2190 = vadd.f32 %v2184, %v2188
    %v2191 = vld [vmem:[%s5 + $0x16] sm:$0x1]
    %v2192 = vld [vmem:[%s5 + $0x17] sm:$0x1]
    %v2193 = vld [vmem:[%s6] sm:$0xff]
    %v2194 = vld [vmem:[%s6 + $0x8] sm:$0xff]
    %v2195 = vld [vmem:[%s6 + $0x10] sm:$0xff]
    %v2196 = vld [vmem:[%s6 + $0x18] sm:$0xff]
    %v2197 = vlaneseq
    %v2198 = vshrl.u32 %v2197, 7
    %v2199 = vsub.s32 0, %v2198
    %v2200 = vrot.slane %v2191, %v2199
    %v2202 = vsel %vm62, %v2189, 0
    %v2205 = vsel %vm62, %v2190, 0
    %2207 = vmatprep.subr.mxu0 0.0
    %2208 = vmatpush1.msra.mxu0 %v2193
    %2209 = vmatprep.subr.mxu0 0.0
    %2210 = vmatpush1.msra.mxu0 %v2194
    %2211 = vmatprep.subr.mxu0 0.0
    %2212 = vmatpush1.msra.mxu0 %v2195
    %2213 = vmatprep.subr.mxu0 0.0
    %2214 = vmatpush1.msra.mxu0 %v2196
    %2215 = vmatprep.subr.mxu0 0.0
    %2216 = vmatpush1.msra.mxu0 0.0
    %2217 = vmatprep.subr.mxu0 0.0
    %2218 = vmatpush1.msra.mxu0 0.0
    %2219 = vmatprep.subr.mxu0 0.0
    %2220 = vmatpush1.msra.mxu0 0.0
    %2221 = vmatprep.subr.mxu0 0.0
    %2222 = vmatpush1.msra.mxu0 0.0
    %2223 = vmatprep.subr.mxu0 0.0
    %2224 = vmatpush1.msra.mxu0 0.0
    %2225 = vmatprep.subr.mxu0 0.0
    %2226 = vmatpush1.msra.mxu0 0.0
    %2227 = vmatprep.subr.mxu0 0.0
    %2228 = vmatpush1.msra.mxu0 0.0
    %2229 = vmatprep.subr.mxu0 0.0
    %2230 = vmatpush1.msra.mxu0 0.0
    %2231 = vmatprep.subr.mxu0 0.0
    %2232 = vmatpush1.msra.mxu0 0.0
    %2233 = vmatprep.subr.mxu0 0.0
    %2234 = vmatpush1.msra.mxu0 0.0
    %2235 = vmatprep.subr.mxu0 0.0
    %2236 = vmatpush1.msra.mxu0 0.0
    %2237 = vmatprep.subr.mxu0 0.0
    %2238 = vmatpush1.msra.mxu0 0.0
    %2239 = vmatprep.subr.mxu0 0.0
    %2240 = vmatpush1.msra.mxu0 0.0
    %2241 = vmatprep.subr.mxu0 0.0
    %2242 = vmatpush1.msra.mxu0 0.0
    %2243 = vmatprep.subr.mxu0 0.0
    %2244 = vmatpush1.msra.mxu0 0.0
    %2245 = vmatprep.subr.mxu0 0.0
    %2246 = vmatpush1.msra.mxu0 0.0
    %2247 = vmatprep.subr.mxu0 0.0
    %2248 = vmatpush1.msra.mxu0 0.0
    %2249 = vmatprep.subr.mxu0 0.0
    %2250 = vmatpush1.msra.mxu0 0.0
    %2251 = vmatprep.subr.mxu0 0.0
    %2252 = vmatpush1.msra.mxu0 0.0
    %2253 = vmatprep.subr.mxu0 0.0
    %2254 = vmatpush1.msra.mxu0 0.0
    %2255 = vmatprep.subr.mxu0 0.0
    %2256 = vmatpush1.msra.mxu0 0.0
    %2257 = vmatprep.subr.mxu0 0.0
    %2258 = vmatpush1.msra.mxu0 0.0
    %2259 = vmatprep.subr.mxu0 0.0
    %2260 = vmatpush1.msra.mxu0 0.0
    %2261 = vmatprep.subr.mxu0 0.0
    %2262 = vmatpush1.msra.mxu0 0.0
    %2263 = vmatprep.subr.mxu0 0.0
    %2264 = vmatpush1.msra.mxu0 0.0
    %2265 = vmatprep.subr.mxu0 0.0
    %2266 = vmatpush1.msra.mxu0 0.0
    %2267 = vmatprep.subr.mxu0 0.0
    %2268 = vmatpush1.msra.mxu0 0.0
    %2269 = vmatprep.subr.mxu0 0.0
    %2270 = vmatpush1.msra.mxu0 0.0
    %2271 = vmatprep.mubr.f32.mxu0 0.0
    %2272 = vmatmul.mubr.f32.gmra.mrb[0].mxu0 %v2202
    %v2273 = vpop.f32.mrb[0].mxu0
    %v2274 = vadd.f32 %v2200, %v2273
    %v2275 = vpop.f32.mrb[0].mxu0
    %2276 = vmatprep.mubr.f32.mxu0 0.0
    %2277 = vmatmul.mubr.f32.gmra.mrb[0].mxu0 %v2205
    %v2278 = vpop.f32.mrb[0].mxu0
    %v2279 = vadd.f32 %v2200, %v2278
    %v2280 = vpop.f32.mrb[0].mxu0
    %2281 = vdwg.mxu0
    %v2282 = vtanh.pop %v2274
    %v2283 = vtanh.pop %v2279
    %v2284 = vld [vmem:[%s7] sm:$0xff]
    %v2285 = vld [vmem:[%s7 + $0x8] sm:$0xff]
    %v2286 = vld [vmem:[%s7 + $0x10] sm:$0xff]
    %v2287 = vld [vmem:[%s7 + $0x18] sm:$0xff]
    %v2288 = vlaneseq
    %v2289 = vshrl.u32 %v2288, 7
    %v2290 = vsub.s32 0, %v2289
    %v2291 = vrot.slane %v2192, %v2290
    %v2293 = vsel %vm62, %v2282, 0
    %v2296 = vsel %vm62, %v2283, 0
    %2298 = vmatprep.subr.mxu0 0.0
    %2299 = vmatpush1.msra.mxu0 %v2284
    %2300 = vmatprep.subr.mxu0 0.0
    %2301 = vmatpush1.msra.mxu0 %v2285
    %2302 = vmatprep.subr.mxu0 0.0
    %2303 = vmatpush1.msra.mxu0 %v2286
    %2304 = vmatprep.subr.mxu0 0.0
    %2305 = vmatpush1.msra.mxu0 %v2287
    %2306 = vmatprep.subr.mxu0 0.0
    %2307 = vmatpush1.msra.mxu0 0.0
    %2308 = vmatprep.subr.mxu0 0.0
    %2309 = vmatpush1.msra.mxu0 0.0
    %2310 = vmatprep.subr.mxu0 0.0
    %2311 = vmatpush1.msra.mxu0 0.0
    %2312 = vmatprep.subr.mxu0 0.0
    %2313 = vmatpush1.msra.mxu0 0.0
    %2314 = vmatprep.subr.mxu0 0.0
    %2315 = vmatpush1.msra.mxu0 0.0
    %2316 = vmatprep.subr.mxu0 0.0
    %2317 = vmatpush1.msra.mxu0 0.0
    %2318 = vmatprep.subr.mxu0 0.0
    %2319 = vmatpush1.msra.mxu0 0.0
    %2320 = vmatprep.subr.mxu0 0.0
    %2321 = vmatpush1.msra.mxu0 0.0
    %2322 = vmatprep.subr.mxu0 0.0
    %2323 = vmatpush1.msra.mxu0 0.0
    %2324 = vmatprep.subr.mxu0 0.0
    %2325 = vmatpush1.msra.mxu0 0.0
    %2326 = vmatprep.subr.mxu0 0.0
    %2327 = vmatpush1.msra.mxu0 0.0
    %2328 = vmatprep.subr.mxu0 0.0
    %2329 = vmatpush1.msra.mxu0 0.0
    %2330 = vmatprep.subr.mxu0 0.0
    %2331 = vmatpush1.msra.mxu0 0.0
    %2332 = vmatprep.subr.mxu0 0.0
    %2333 = vmatpush1.msra.mxu0 0.0
    %2334 = vmatprep.subr.mxu0 0.0
    %2335 = vmatpush1.msra.mxu0 0.0
    %2336 = vmatprep.subr.mxu0 0.0
    %2337 = vmatpush1.msra.mxu0 0.0
    %2338 = vmatprep.subr.mxu0 0.0
    %2339 = vmatpush1.msra.mxu0 0.0
    %2340 = vmatprep.subr.mxu0 0.0
    %2341 = vmatpush1.msra.mxu0 0.0
    %2342 = vmatprep.subr.mxu0 0.0
    %2343 = vmatpush1.msra.mxu0 0.0
    %2344 = vmatprep.subr.mxu0 0.0
    %2345 = vmatpush1.msra.mxu0 0.0
    %2346 = vmatprep.subr.mxu0 0.0
    %2347 = vmatpush1.msra.mxu0 0.0
    %2348 = vmatprep.subr.mxu0 0.0
    %2349 = vmatpush1.msra.mxu0 0.0
    %2350 = vmatprep.subr.mxu0 0.0
    %2351 = vmatpush1.msra.mxu0 0.0
    %2352 = vmatprep.subr.mxu0 0.0
    %2353 = vmatpush1.msra.mxu0 0.0
    %2354 = vmatprep.subr.mxu0 0.0
    %2355 = vmatpush1.msra.mxu0 0.0
    %2356 = vmatprep.subr.mxu0 0.0
    %2357 = vmatpush1.msra.mxu0 0.0
    %2358 = vmatprep.subr.mxu0 0.0
    %2359 = vmatpush1.msra.mxu0 0.0
    %2360 = vmatprep.subr.mxu0 0.0
    %2361 = vmatpush1.msra.mxu0 0.0
    %2362 = vmatprep.mubr.f32.mxu0 0.0
    %2363 = vmatmul.mubr.f32.gmra.mrb[0].mxu0 %v2293
    %v2364 = vpop.f32.mrb[0].mxu0
    %v2365 = vadd.f32 %v2291, %v2364
    %v2366 = vpop.f32.mrb[0].mxu0
    %2367 = vmatprep.mubr.f32.mxu0 0.0
    %2368 = vmatmul.mubr.f32.gmra.mrb[0].mxu0 %v2296
    %v2369 = vpop.f32.mrb[0].mxu0
    %v2370 = vadd.f32 %v2291, %v2369
    %v2371 = vpop.f32.mrb[0].mxu0
    %2372 = vdwg.mxu0
    %2373 = vst [vmem:[#allocation5] sm:$0xff] %v2365
    %2374 = vst [vmem:[#allocation5 + $0x8] sm:$0xff] %v2370
    // Predicated region
    $region38: #{tpu_custom_call.1} parent=1 // pred_check
      _
    $region39: #{tpu_custom_call.1} parent=1 // pred_check_branch
      %2376 = sbr.rel (0) target = $region41
    $region40: #{tpu_custom_call.1} parent=1 // pred_region
      %s2378 = ssub.s32 256, 256
      %2379 = vsyncadd [#allocation4], %s2378
      %s2380 = sshll.u32 [#allocation5], 4
      %s2381 = int_to_ptr.vmem [resolvable:$true] %s2380
      %2386 = dma.vmem_to_hbm [thread:$0]  %s2381, 256, %s8, [#allocation4], 128, 128, 8
    $region41: #{tpu_custom_call.1} parent=1 // pred_fallthru
      _
    // Predicated region
    $region42: #{tpu_custom_call.1} parent=1 // pred_check
      _
    $region43: #{tpu_custom_call.1} parent=1 // pred_check_branch
      %2388 = sbr.rel (0) target = $region45
    $region44: #{tpu_custom_call.1} parent=1 // pred_region
      %2389 = dma.done [#allocation4], 256
    $region45: #{tpu_custom_call.1} parent=1 // pred_fallthru
      _
    %2390 = vsyncpa [#allocation3], 1
    %2391 = vsyncpa [#allocation4], 1

</llo_original>
